<compile_context>
chip_gen: v5e
topology: v5e:2x2
jax: 0.10.0
libtpu: 0.0.40
codegen_flags: <defaults>
</compile_context>

<pallas_src>
import functools

import jax
import jax.numpy as jnp
import numpy as np
from jax.experimental import pallas as pl
from jax.experimental.pallas import tpu as pltpu


def _round_up(v, m):
    return ((int(v) + int(m) - 1) // int(m)) * int(m)


def _padded_block_bytes(shape, itemsize=4, sublane=8, lane=128):
    """VMEM footprint of one f32 block after (sublane, lane) tile padding."""
    shape = tuple(int(s) for s in shape)
    if len(shape) == 1:
        return _round_up(shape[0], lane) * itemsize
    lead = 1
    for s in shape[:-2]:
        lead *= s
    return lead * _round_up(shape[-2], sublane) * _round_up(shape[-1], lane) * itemsize


def _dactbae_kernel(xt_ref, xht_ref, driftt_ref, dpi_ref, cov_ref, onp_ref,
                    hess_ref, mpf_ref, opf_ref, acc_ref, acc2_ref,
                    *, cw, tdw, tbw, inv_n, inv_b, step_axis):
    """One batch tile (tb samples on the lane axis).

    Ref layouts (batch-minor unless noted):
      xt/xht/driftt : (D, tb)            [i, b]
      dpi           : (d, D, tb)         [k, p, b]       = dpi[b, k, p]
      cov           : (D, D, tb)         [q, p, b]       = cov[b, p, q]
      onp           : (D, D, tb)         [j, i, b]       = obs_normal_proj[b, i, j]
      hess          : (d*d, D, tb)       [k*d+j, i, b]   = H[b, i, k, j]
      mpf / opf     : (tb, D*D)          batch-major, lane-dense flat
      acc           : (1, 1, tb)  per-lane partials of mse/contractive/drift terms
      acc2          : (1, 1, D*D) per-lane partials of the tangent-bundle term
    """
    s = pl.program_id(step_axis)

    @pl.when(s == 0)
    def _init():
        acc_ref[...] = jnp.zeros(acc_ref.shape, jnp.float32)
        acc2_ref[...] = jnp.zeros(acc2_ref.shape, jnp.float32)

    f32 = jnp.float32
    d, D, tb = dpi_ref.shape

    x = xt_ref[...].astype(f32)            # (D, tb)
    xh = xht_ref[...].astype(f32)          # (D, tb)
    drift = driftt_ref[...].astype(f32)    # (D, tb)
    dpi = dpi_ref[...].astype(f32)         # (d, D, tb)
    cov = cov_ref[...].astype(f32)         # (D, D, tb)

    # qv[i, b] = sum_{j,k} bbt[b, j, k] * H[b, i, k, j],  bbt = dpi @ cov @ dpi^T.
    # Unrolled over the tiny (k, j) axes; every reduction is over a *leading*
    # axis of lane-dense data -> plain vreg adds (no XLU lane reductions), and
    # the largest transient is one cov-sized product (no (tb,d,D,D) broadcast).
    qv = jnp.zeros((D, tb), f32)
    for k in range(d):
        # tmp_k[p, b] = sum_q cov[b, p, q] * dpi[b, k, q]
        tmp_k = jnp.sum(cov * dpi[k][:, None, :], axis=0)                  # (D, tb)
        for j in range(d):
            # bbt[b, j, k]
            bbt_jk = jnp.sum(dpi[j] * tmp_k, axis=0, keepdims=True)        # (1, tb)
            qv = qv + hess_ref[k * d + j].astype(f32) * bbt_jk             # (D, tb)

    tangent = drift - 0.5 * qv                                             # (D, tb)
    onp = onp_ref[...].astype(f32)                                         # (D, D, tb)
    # npv[i, b] = sum_j obs_normal_proj[b, i, j] * tangent[b, j]
    npv = jnp.sum(onp * tangent[:, None, :], axis=0)                       # (D, tb)

    mse_col = jnp.sum((xh - x) ** 2, axis=0, keepdims=True)                # (1, tb)
    con_col = jnp.sum(jnp.sum(dpi * dpi, axis=0), axis=0, keepdims=True)   # (1, tb)
    tde_col = jnp.sum(npv * npv, axis=0, keepdims=True)                    # (1, tb)

    acc_ref[...] += (inv_n * mse_col
                     + (cw * inv_b) * con_col
                     + (tdw * inv_b) * tde_col)[None]                      # (1, 1, tb)

    # Tangent-bundle term on the lane-dense flat blocks (pure elementwise).
    diff = mpf_ref[...].astype(f32) - opf_ref[...].astype(f32)             # (tb, DD)
    acc2_ref[...] += ((tbw * inv_b)
                      * jnp.sum(diff * diff, axis=0, keepdims=True))[None]  # (1, 1, DD)


def dactbae_loss(x, x_hat, dpi, model_proj, dec_hess,
                 obs_proj, obs_normal_proj, drift, cov,
                 contractive_weight=1.0,
                 tangent_drift_weight=1.0,
                 tangent_bundle_weight=1.0,
                 tile_b=None,
                 core_split=None):
    B, D = x.shape
    d = int(dpi.shape[1])
    dd = d * d
    DD = D * D
    LANE = 128

    cw = float(contractive_weight)
    tdw = float(tangent_drift_weight)
    tbw = float(tangent_bundle_weight)
    inv_n = 1.0 / float(B * D)   # true (un-padded) divisors
    inv_b = 1.0 / float(B)

    # ---- per-generation VMEM budget with (8,128)-padded accounting ----------
    try:
        vmem_cap = int(pltpu.get_tpu_info().vmem_capacity_bytes)
    except Exception:
        vmem_cap = 64 * 1024 * 1024          # conservative (v7x-sized) fallback
    budget = int(vmem_cap * 0.6)             # ~38 MiB on v7x, ~77 MiB on v5e/v6e
    vmem_limit = int(vmem_cap * 0.85)

    def tile_bytes(t):
        ins = (3 * _padded_block_bytes((D, t))
               + _padded_block_bytes((d, D, t))
               + 2 * _padded_block_bytes((D, D, t))
               + _padded_block_bytes((dd, D, t))
               + 2 * _padded_block_bytes((t, DD)))
        work = (3 * _padded_block_bytes((D, D, t))       # cov-sized transients
                + 6 * _padded_block_bytes((D, t))
                + _padded_block_bytes((d, D, t))
                + _padded_block_bytes((t, DD)))
        return 2 * ins + work                            # double-buffered inputs + transients

    # ---- core split: only v7x has two TensorCores per chip -------------------
    if core_split is None:
        core_split = 1
        try:
            kind = jax.devices()[0].device_kind.lower()
            if "v7" in kind or "7x" in kind:
                core_split = 2
        except Exception:
            core_split = 1
    core_split = max(1, int(core_split))

    # ---- batch (lane) tile size ----------------------------------------------
    if B < LANE:
        # single full-batch tile: every block dim equals the full array dim.
        tb, n_tiles, n_split, B_pad = B, 1, 1, B
    else:
        tb_max = LANE
        while tb_max < 2048 and tile_bytes(tb_max * 2) <= budget:
            tb_max *= 2
        if tile_b is not None:
            tb_max = max(LANE, min(tb_max, _round_up(int(tile_b), LANE)))
        n_tiles = pl.cdiv(B, tb_max)
        n_split = core_split if core_split > 1 else 1
        if n_split > 1:
            n_tiles = _round_up(max(n_tiles, n_split), n_split)
        tb = min(_round_up(pl.cdiv(B, n_tiles), LANE), tb_max)
        B_pad = tb * n_tiles
    steps = n_tiles // n_split

    # ---- wrapper-side layout plumbing ----------------------------------------
    if B_pad != B:
        def padb(a):
            return jnp.pad(a, ((0, B_pad - B),) + ((0, 0),) * (a.ndim - 1))
        x, x_hat, drift = padb(x), padb(x_hat), padb(drift)
        dpi, cov = padb(dpi), padb(cov)
        obs_normal_proj, dec_hess = padb(obs_normal_proj), padb(dec_hess)
        model_proj, obs_proj = padb(model_proj), padb(obs_proj)

    x_t = x.T                                            # (D, Bp)
    xh_t = x_hat.T
    drift_t = drift.T
    dpi_t = jnp.transpose(dpi, (1, 2, 0))                # (d, D, Bp)
    cov_t = jnp.transpose(cov, (2, 1, 0))                # (q, p, Bp)
    onp_t = jnp.transpose(obs_normal_proj, (2, 1, 0))    # (j, i, Bp)
    hess_t = jnp.transpose(dec_hess.reshape(B_pad, D, dd), (2, 1, 0))   # (k*d+j, i, Bp)
    mp_f = model_proj.reshape(B_pad, DD)                 # (Bp, DD), lane-dense
    op_f = obs_proj.reshape(B_pad, DD)

    kernel = functools.partial(
        _dactbae_kernel, cw=cw, tdw=tdw, tbw=tbw, inv_n=inv_n, inv_b=inv_b,
        step_axis=1 if n_split > 1 else 0)

    if n_split > 1:
        grid = (n_split, steps)
        vec_map = lambda c, s: (0, c * steps + s)
        mat_map = lambda c, s: (0, 0, c * steps + s)
        row_map = lambda c, s: (c * steps + s, 0)
        out_map = lambda c, s: (c, 0, 0)
        sem = (pltpu.CORE_PARALLEL, pltpu.ARBITRARY)
    else:
        grid = (steps,)
        vec_map = lambda s: (0, s)
        mat_map = lambda s: (0, 0, s)
        row_map = lambda s: (s, 0)
        out_map = lambda s: (0, 0, 0)
        sem = (pltpu.ARBITRARY,)

    grid_spec = pltpu.PrefetchScalarGridSpec(
        num_scalar_prefetch=0,
        grid=grid,
        in_specs=[
            pl.BlockSpec((D, tb), vec_map),        # x^T
            pl.BlockSpec((D, tb), vec_map),        # x_hat^T
            pl.BlockSpec((D, tb), vec_map),        # drift^T
            pl.BlockSpec((d, D, tb), mat_map),     # dpi (batch-minor)
            pl.BlockSpec((D, D, tb), mat_map),     # cov (batch-minor)
            pl.BlockSpec((D, D, tb), mat_map),     # obs_normal_proj (batch-minor)
            pl.BlockSpec((dd, D, tb), mat_map),    # decoder hessian (batch-minor)
            pl.BlockSpec((tb, DD), row_map),       # model_proj flat
            pl.BlockSpec((tb, DD), row_map),       # obs_proj flat
        ],
        out_specs=[
            pl.BlockSpec((1, 1, tb), out_map),     # per-lane partials (vector terms)
            pl.BlockSpec((1, 1, DD), out_map),     # per-lane partials (tangent bundle)
        ],
    )

    part_vec, part_mat = pl.pallas_call(
        kernel,
        out_shape=(jax.ShapeDtypeStruct((n_split, 1, tb), jnp.float32),
                   jax.ShapeDtypeStruct((n_split, 1, DD), jnp.float32)),
        grid_spec=grid_spec,
        compiler_params=pltpu.CompilerParams(
            dimension_semantics=sem, vmem_limit_bytes=vmem_limit),
    )(x_t, xh_t, drift_t, dpi_t, cov_t, onp_t, hess_t, mp_f, op_f)

    return jnp.sum(part_vec) + jnp.sum(part_mat)


def dactbae_loss_ref(x, x_hat, dpi, model_proj, dec_hess,
                     obs_proj, obs_normal_proj, drift, cov,
                     cw=1.0, tdw=1.0, tbw=1.0):
    """Plain-JAX reference mirroring the PyTorch semantics (full f32 precision)."""
    hp = jax.lax.Precision.HIGHEST
    bbt = jnp.einsum('bij,bjk,blk->bil', dpi, cov, dpi, precision=hp)
    qv = jnp.einsum('bjk,bikj->bi', bbt, dec_hess, precision=hp)   # trace(bbt @ H_i)
    tangent = drift - 0.5 * qv
    npv = jnp.einsum('bij,bj->bi', obs_normal_proj, tangent, precision=hp)
    mse = jnp.mean((x_hat - x) ** 2)
    contractive = jnp.mean(jnp.sum(dpi ** 2, axis=(1, 2)))
    tbe = jnp.mean(jnp.sum((model_proj - obs_proj) ** 2, axis=(1, 2)))
    tde = jnp.mean(jnp.sum(npv ** 2, axis=1))
    return mse + cw * contractive + tbw * tbe + tdw * tde


def _make_inputs(key, B, D, d):
    ks = jax.random.split(key, 8)
    x = jax.random.normal(ks[0], (B, D), jnp.float32)
    x_hat = x + 0.05 * jax.random.normal(ks[1], (B, D), jnp.float32)
    dpi = jax.random.normal(ks[2], (B, d, D), jnp.float32)
    model_proj = jax.random.normal(ks[3], (B, D, D), jnp.float32)
    h = jax.random.normal(ks[4], (B, D, d, d), jnp.float32)
    dec_hess = 0.5 * (h + jnp.swapaxes(h, -1, -2))          # symmetric Hessians
    p = jax.random.normal(ks[5], (B, D, D), jnp.float32)
    obs_proj = 0.5 * (p + jnp.swapaxes(p, -1, -2))
    obs_normal_proj = (jnp.broadcast_to(jnp.eye(D, dtype=jnp.float32), (B, D, D))
                       - obs_proj)
    drift = jax.random.normal(ks[6], (B, D), jnp.float32)
    a = jax.random.normal(ks[7], (B, D, D), jnp.float32)
    cov = jnp.einsum('bij,bkj->bik', a, a) / D               # symmetric PSD
    return (x, x_hat, dpi, model_proj, dec_hess, obs_proj, obs_normal_proj, drift, cov)


if __name__ == "__main__":
    D, d = 16, 4
    key = jax.random.PRNGKey(0)
    k_small, k_big = jax.random.split(key)

    # Case 1: tiny batch (B < 128 -> single full-batch tile path).
    args_small = _make_inputs(k_small, B=8, D=D, d=d)
    # Case 2: B=200 with tile_b=128 -> zero-padded tail + 2-step accumulation.
    args_big = _make_inputs(k_big, B=200, D=D, d=d)

    for args, kw in ((args_small, {}), (args_big, {"tile_b": 128})):
        loss = dactbae_loss(
            *args,
            contractive_weight=0.7,
            tangent_drift_weight=1.3,
            tangent_bundle_weight=0.9,
            **kw)
        loss = jax.block_until_ready(loss)
        ref = dactbae_loss_ref(*args, cw=0.7, tdw=1.3, tbw=0.9)
        np.testing.assert_allclose(np.asarray(loss), np.asarray(ref),
                                   rtol=5e-4, atol=1e-2)

    print("KERNEL_OK")
</pallas_src>

<mosaic_0001>
module attributes {stable_mosaic.version = 11 : i64} {
  func.func @_dactbae_kernel(%arg0: i32, %arg1: memref<16x8xf32, #tpu.memory_space<vmem>>, %arg2: memref<16x8xf32, #tpu.memory_space<vmem>>, %arg3: memref<16x8xf32, #tpu.memory_space<vmem>>, %arg4: memref<4x16x8xf32, #tpu.memory_space<vmem>>, %arg5: memref<16x16x8xf32, #tpu.memory_space<vmem>>, %arg6: memref<16x16x8xf32, #tpu.memory_space<vmem>>, %arg7: memref<16x16x8xf32, #tpu.memory_space<vmem>>, %arg8: memref<8x256xf32, #tpu.memory_space<vmem>>, %arg9: memref<8x256xf32, #tpu.memory_space<vmem>>, %arg10: memref<1x1x8xf32, #tpu.memory_space<vmem>>, %arg11: memref<1x1x256xf32, #tpu.memory_space<vmem>>) attributes {dimension_semantics = [#tpu.dimension_semantics<arbitrary>], iteration_bounds = array<i64: 1>, scalar_prefetch = 0 : i64, scratch_operands = 0 : i64, tpu.core_type = #tpu.core_type<tc>, window_params = [{transform_indices = @transform_0, window_bounds = array<i64: 16, 8>}, {transform_indices = @transform_1, window_bounds = array<i64: 16, 8>}, {transform_indices = @transform_2, window_bounds = array<i64: 16, 8>}, {transform_indices = @transform_3, window_bounds = array<i64: 4, 16, 8>}, {transform_indices = @transform_4, window_bounds = array<i64: 16, 16, 8>}, {transform_indices = @transform_5, window_bounds = array<i64: 16, 16, 8>}, {transform_indices = @transform_6, window_bounds = array<i64: 16, 16, 8>}, {transform_indices = @transform_7, window_bounds = array<i64: 8, 256>}, {transform_indices = @transform_8, window_bounds = array<i64: 8, 256>}, {pipeline_mode = #tpu.pipeline_mode<synchronous>, transform_indices = @transform_9, window_bounds = array<i64: 1, 1, 8>}, {pipeline_mode = #tpu.pipeline_mode<synchronous>, transform_indices = @transform_10, window_bounds = array<i64: 1, 1, 256>}]} {
    %c0_i32 = arith.constant 0 : i32
    %0 = arith.cmpi eq, %arg0, %c0_i32 : i32
    %1 = arith.extui %0 : i1 to i32
    %c0_i32_0 = arith.constant 0 : i32
    %2 = arith.cmpi ne, %1, %c0_i32_0 : i32
    scf.if %2 {
      %cst_95 = arith.constant 0.000000e+00 : f32
      %236 = vector.broadcast %cst_95 : f32 to vector<1x1x8xf32>
      %c0_96 = arith.constant 0 : index
      %c0_97 = arith.constant 0 : index
      %c0_98 = arith.constant 0 : index
      %237 = vector.load %arg10[%c0_96, %c0_97, %c0_98] : memref<1x1x8xf32, #tpu.memory_space<vmem>>, vector<1x1x8xf32>
      tpu.vector_store %arg10[%c0_96, %c0_97, %c0_98], %236 {strides = array<i32>} : memref<1x1x8xf32, #tpu.memory_space<vmem>>, vector<1x1x8xf32>,
      %cst_99 = arith.constant 0.000000e+00 : f32
      %238 = vector.broadcast %cst_99 : f32 to vector<1x1x256xf32>
      %c0_100 = arith.constant 0 : index
      %c0_101 = arith.constant 0 : index
      %c0_102 = arith.constant 0 : index
      %239 = vector.load %arg11[%c0_100, %c0_101, %c0_102] : memref<1x1x256xf32, #tpu.memory_space<vmem>>, vector<1x1x256xf32>
      tpu.vector_store %arg11[%c0_100, %c0_101, %c0_102], %238 {strides = array<i32>} : memref<1x1x256xf32, #tpu.memory_space<vmem>>, vector<1x1x256xf32>,
    } else {
    }
    %c0 = arith.constant 0 : index
    %c0_1 = arith.constant 0 : index
    %3 = vector.load %arg1[%c0, %c0_1] : memref<16x8xf32, #tpu.memory_space<vmem>>, vector<16x8xf32>
    %c0_2 = arith.constant 0 : index
    %c0_3 = arith.constant 0 : index
    %4 = vector.load %arg2[%c0_2, %c0_3] : memref<16x8xf32, #tpu.memory_space<vmem>>, vector<16x8xf32>
    %c0_4 = arith.constant 0 : index
    %c0_5 = arith.constant 0 : index
    %5 = vector.load %arg3[%c0_4, %c0_5] : memref<16x8xf32, #tpu.memory_space<vmem>>, vector<16x8xf32>
    %c0_6 = arith.constant 0 : index
    %c0_7 = arith.constant 0 : index
    %c0_8 = arith.constant 0 : index
    %6 = vector.load %arg4[%c0_6, %c0_7, %c0_8] : memref<4x16x8xf32, #tpu.memory_space<vmem>>, vector<4x16x8xf32>
    %c0_9 = arith.constant 0 : index
    %c0_10 = arith.constant 0 : index
    %c0_11 = arith.constant 0 : index
    %7 = vector.load %arg5[%c0_9, %c0_10, %c0_11] : memref<16x16x8xf32, #tpu.memory_space<vmem>>, vector<16x16x8xf32>
    %cst = arith.constant 0.000000e+00 : f32
    %8 = vector.broadcast %cst : f32 to vector<16x8xf32>
    %9 = vector.extract_strided_slice %6 {offsets = [0, 0, 0], sizes = [1, 16, 8], strides = [1, 1, 1]} : vector<4x16x8xf32> to vector<1x16x8xf32>
    %10 = vector.shape_cast %9 : vector<1x16x8xf32> to vector<16x8xf32>
    %11 = vector.shape_cast %10 : vector<16x8xf32> to vector<16x1x8xf32>
    %12 = vector.broadcast %11 : vector<16x1x8xf32> to vector<16x16x8xf32>
    %13 = arith.mulf %7, %12 : vector<16x16x8xf32>
    %cst_12 = arith.constant dense<0.000000e+00> : vector<16x8xf32>
    %14 = vector.multi_reduction <add>, %13, %cst_12 [0] : vector<16x16x8xf32> to vector<16x8xf32>
    %15 = vector.extract_strided_slice %6 {offsets = [0, 0, 0], sizes = [1, 16, 8], strides = [1, 1, 1]} : vector<4x16x8xf32> to vector<1x16x8xf32>
    %16 = vector.shape_cast %15 : vector<1x16x8xf32> to vector<16x8xf32>
    %17 = arith.mulf %16, %14 : vector<16x8xf32>
    %cst_13 = arith.constant dense<0.000000e+00> : vector<8xf32>
    %18 = vector.multi_reduction <add>, %17, %cst_13 [0] : vector<16x8xf32> to vector<8xf32>
    %19 = vector.shape_cast %18 : vector<8xf32> to vector<1x8xf32>
    %c0_14 = arith.constant 0 : index
    %c0_15 = arith.constant 0 : index
    %c0_16 = arith.constant 0 : index
    %20 = vector.load %arg7[%c0_14, %c0_15, %c0_16] : memref<16x16x8xf32, #tpu.memory_space<vmem>>, vector<1x16x8xf32>
    %21 = vector.shape_cast %20 : vector<1x16x8xf32> to vector<16x8xf32>
    %22 = vector.broadcast %19 : vector<1x8xf32> to vector<16x8xf32>
    %23 = arith.mulf %21, %22 : vector<16x8xf32>
    %24 = arith.addf %8, %23 : vector<16x8xf32>
    %25 = vector.extract_strided_slice %6 {offsets = [1, 0, 0], sizes = [1, 16, 8], strides = [1, 1, 1]} : vector<4x16x8xf32> to vector<1x16x8xf32>
    %26 = vector.shape_cast %25 : vector<1x16x8xf32> to vector<16x8xf32>
    %27 = arith.mulf %26, %14 : vector<16x8xf32>
    %cst_17 = arith.constant dense<0.000000e+00> : vector<8xf32>
    %28 = vector.multi_reduction <add>, %27, %cst_17 [0] : vector<16x8xf32> to vector<8xf32>
    %29 = vector.shape_cast %28 : vector<8xf32> to vector<1x8xf32>
    %c1 = arith.constant 1 : index
    %c0_18 = arith.constant 0 : index
    %c0_19 = arith.constant 0 : index
    %30 = vector.load %arg7[%c1, %c0_18, %c0_19] : memref<16x16x8xf32, #tpu.memory_space<vmem>>, vector<1x16x8xf32>
    %31 = vector.shape_cast %30 : vector<1x16x8xf32> to vector<16x8xf32>
    %32 = vector.broadcast %29 : vector<1x8xf32> to vector<16x8xf32>
    %33 = arith.mulf %31, %32 : vector<16x8xf32>
    %34 = arith.addf %24, %33 : vector<16x8xf32>
    %35 = vector.extract_strided_slice %6 {offsets = [2, 0, 0], sizes = [1, 16, 8], strides = [1, 1, 1]} : vector<4x16x8xf32> to vector<1x16x8xf32>
    %36 = vector.shape_cast %35 : vector<1x16x8xf32> to vector<16x8xf32>
    %37 = arith.mulf %36, %14 : vector<16x8xf32>
    %cst_20 = arith.constant dense<0.000000e+00> : vector<8xf32>
    %38 = vector.multi_reduction <add>, %37, %cst_20 [0] : vector<16x8xf32> to vector<8xf32>
    %39 = vector.shape_cast %38 : vector<8xf32> to vector<1x8xf32>
    %c2 = arith.constant 2 : index
    %c0_21 = arith.constant 0 : index
    %c0_22 = arith.constant 0 : index
    %40 = vector.load %arg7[%c2, %c0_21, %c0_22] : memref<16x16x8xf32, #tpu.memory_space<vmem>>, vector<1x16x8xf32>
    %41 = vector.shape_cast %40 : vector<1x16x8xf32> to vector<16x8xf32>
    %42 = vector.broadcast %39 : vector<1x8xf32> to vector<16x8xf32>
    %43 = arith.mulf %41, %42 : vector<16x8xf32>
    %44 = arith.addf %34, %43 : vector<16x8xf32>
    %45 = vector.extract_strided_slice %6 {offsets = [3, 0, 0], sizes = [1, 16, 8], strides = [1, 1, 1]} : vector<4x16x8xf32> to vector<1x16x8xf32>
    %46 = vector.shape_cast %45 : vector<1x16x8xf32> to vector<16x8xf32>
    %47 = arith.mulf %46, %14 : vector<16x8xf32>
    %cst_23 = arith.constant dense<0.000000e+00> : vector<8xf32>
    %48 = vector.multi_reduction <add>, %47, %cst_23 [0] : vector<16x8xf32> to vector<8xf32>
    %49 = vector.shape_cast %48 : vector<8xf32> to vector<1x8xf32>
    %c3 = arith.constant 3 : index
    %c0_24 = arith.constant 0 : index
    %c0_25 = arith.constant 0 : index
    %50 = vector.load %arg7[%c3, %c0_24, %c0_25] : memref<16x16x8xf32, #tpu.memory_space<vmem>>, vector<1x16x8xf32>
    %51 = vector.shape_cast %50 : vector<1x16x8xf32> to vector<16x8xf32>
    %52 = vector.broadcast %49 : vector<1x8xf32> to vector<16x8xf32>
    %53 = arith.mulf %51, %52 : vector<16x8xf32>
    %54 = arith.addf %44, %53 : vector<16x8xf32>
    %55 = vector.extract_strided_slice %6 {offsets = [1, 0, 0], sizes = [1, 16, 8], strides = [1, 1, 1]} : vector<4x16x8xf32> to vector<1x16x8xf32>
    %56 = vector.shape_cast %55 : vector<1x16x8xf32> to vector<16x8xf32>
    %57 = vector.shape_cast %56 : vector<16x8xf32> to vector<16x1x8xf32>
    %58 = vector.broadcast %57 : vector<16x1x8xf32> to vector<16x16x8xf32>
    %59 = arith.mulf %7, %58 : vector<16x16x8xf32>
    %cst_26 = arith.constant dense<0.000000e+00> : vector<16x8xf32>
    %60 = vector.multi_reduction <add>, %59, %cst_26 [0] : vector<16x16x8xf32> to vector<16x8xf32>
    %61 = vector.extract_strided_slice %6 {offsets = [0, 0, 0], sizes = [1, 16, 8], strides = [1, 1, 1]} : vector<4x16x8xf32> to vector<1x16x8xf32>
    %62 = vector.shape_cast %61 : vector<1x16x8xf32> to vector<16x8xf32>
    %63 = arith.mulf %62, %60 : vector<16x8xf32>
    %cst_27 = arith.constant dense<0.000000e+00> : vector<8xf32>
    %64 = vector.multi_reduction <add>, %63, %cst_27 [0] : vector<16x8xf32> to vector<8xf32>
    %65 = vector.shape_cast %64 : vector<8xf32> to vector<1x8xf32>
    %c4 = arith.constant 4 : index
    %c0_28 = arith.constant 0 : index
    %c0_29 = arith.constant 0 : index
    %66 = vector.load %arg7[%c4, %c0_28, %c0_29] : memref<16x16x8xf32, #tpu.memory_space<vmem>>, vector<1x16x8xf32>
    %67 = vector.shape_cast %66 : vector<1x16x8xf32> to vector<16x8xf32>
    %68 = vector.broadcast %65 : vector<1x8xf32> to vector<16x8xf32>
    %69 = arith.mulf %67, %68 : vector<16x8xf32>
    %70 = arith.addf %54, %69 : vector<16x8xf32>
    %71 = vector.extract_strided_slice %6 {offsets = [1, 0, 0], sizes = [1, 16, 8], strides = [1, 1, 1]} : vector<4x16x8xf32> to vector<1x16x8xf32>
    %72 = vector.shape_cast %71 : vector<1x16x8xf32> to vector<16x8xf32>
    %73 = arith.mulf %72, %60 : vector<16x8xf32>
    %cst_30 = arith.constant dense<0.000000e+00> : vector<8xf32>
    %74 = vector.multi_reduction <add>, %73, %cst_30 [0] : vector<16x8xf32> to vector<8xf32>
    %75 = vector.shape_cast %74 : vector<8xf32> to vector<1x8xf32>
    %c5 = arith.constant 5 : index
    %c0_31 = arith.constant 0 : index
    %c0_32 = arith.constant 0 : index
    %76 = vector.load %arg7[%c5, %c0_31, %c0_32] : memref<16x16x8xf32, #tpu.memory_space<vmem>>, vector<1x16x8xf32>
    %77 = vector.shape_cast %76 : vector<1x16x8xf32> to vector<16x8xf32>
    %78 = vector.broadcast %75 : vector<1x8xf32> to vector<16x8xf32>
    %79 = arith.mulf %77, %78 : vector<16x8xf32>
    %80 = arith.addf %70, %79 : vector<16x8xf32>
    %81 = vector.extract_strided_slice %6 {offsets = [2, 0, 0], sizes = [1, 16, 8], strides = [1, 1, 1]} : vector<4x16x8xf32> to vector<1x16x8xf32>
    %82 = vector.shape_cast %81 : vector<1x16x8xf32> to vector<16x8xf32>
    %83 = arith.mulf %82, %60 : vector<16x8xf32>
    %cst_33 = arith.constant dense<0.000000e+00> : vector<8xf32>
    %84 = vector.multi_reduction <add>, %83, %cst_33 [0] : vector<16x8xf32> to vector<8xf32>
    %85 = vector.shape_cast %84 : vector<8xf32> to vector<1x8xf32>
    %c6 = arith.constant 6 : index
    %c0_34 = arith.constant 0 : index
    %c0_35 = arith.constant 0 : index
    %86 = vector.load %arg7[%c6, %c0_34, %c0_35] : memref<16x16x8xf32, #tpu.memory_space<vmem>>, vector<1x16x8xf32>
    %87 = vector.shape_cast %86 : vector<1x16x8xf32> to vector<16x8xf32>
    %88 = vector.broadcast %85 : vector<1x8xf32> to vector<16x8xf32>
    %89 = arith.mulf %87, %88 : vector<16x8xf32>
    %90 = arith.addf %80, %89 : vector<16x8xf32>
    %91 = vector.extract_strided_slice %6 {offsets = [3, 0, 0], sizes = [1, 16, 8], strides = [1, 1, 1]} : vector<4x16x8xf32> to vector<1x16x8xf32>
    %92 = vector.shape_cast %91 : vector<1x16x8xf32> to vector<16x8xf32>
    %93 = arith.mulf %92, %60 : vector<16x8xf32>
    %cst_36 = arith.constant dense<0.000000e+00> : vector<8xf32>
    %94 = vector.multi_reduction <add>, %93, %cst_36 [0] : vector<16x8xf32> to vector<8xf32>
    %95 = vector.shape_cast %94 : vector<8xf32> to vector<1x8xf32>
    %c7 = arith.constant 7 : index
    %c0_37 = arith.constant 0 : index
    %c0_38 = arith.constant 0 : index
    %96 = vector.load %arg7[%c7, %c0_37, %c0_38] : memref<16x16x8xf32, #tpu.memory_space<vmem>>, vector<1x16x8xf32>
    %97 = vector.shape_cast %96 : vector<1x16x8xf32> to vector<16x8xf32>
    %98 = vector.broadcast %95 : vector<1x8xf32> to vector<16x8xf32>
    %99 = arith.mulf %97, %98 : vector<16x8xf32>
    %100 = arith.addf %90, %99 : vector<16x8xf32>
    %101 = vector.extract_strided_slice %6 {offsets = [2, 0, 0], sizes = [1, 16, 8], strides = [1, 1, 1]} : vector<4x16x8xf32> to vector<1x16x8xf32>
    %102 = vector.shape_cast %101 : vector<1x16x8xf32> to vector<16x8xf32>
    %103 = vector.shape_cast %102 : vector<16x8xf32> to vector<16x1x8xf32>
    %104 = vector.broadcast %103 : vector<16x1x8xf32> to vector<16x16x8xf32>
    %105 = arith.mulf %7, %104 : vector<16x16x8xf32>
    %cst_39 = arith.constant dense<0.000000e+00> : vector<16x8xf32>
    %106 = vector.multi_reduction <add>, %105, %cst_39 [0] : vector<16x16x8xf32> to vector<16x8xf32>
    %107 = vector.extract_strided_slice %6 {offsets = [0, 0, 0], sizes = [1, 16, 8], strides = [1, 1, 1]} : vector<4x16x8xf32> to vector<1x16x8xf32>
    %108 = vector.shape_cast %107 : vector<1x16x8xf32> to vector<16x8xf32>
    %109 = arith.mulf %108, %106 : vector<16x8xf32>
    %cst_40 = arith.constant dense<0.000000e+00> : vector<8xf32>
    %110 = vector.multi_reduction <add>, %109, %cst_40 [0] : vector<16x8xf32> to vector<8xf32>
    %111 = vector.shape_cast %110 : vector<8xf32> to vector<1x8xf32>
    %c8 = arith.constant 8 : index
    %c0_41 = arith.constant 0 : index
    %c0_42 = arith.constant 0 : index
    %112 = vector.load %arg7[%c8, %c0_41, %c0_42] : memref<16x16x8xf32, #tpu.memory_space<vmem>>, vector<1x16x8xf32>
    %113 = vector.shape_cast %112 : vector<1x16x8xf32> to vector<16x8xf32>
    %114 = vector.broadcast %111 : vector<1x8xf32> to vector<16x8xf32>
    %115 = arith.mulf %113, %114 : vector<16x8xf32>
    %116 = arith.addf %100, %115 : vector<16x8xf32>
    %117 = vector.extract_strided_slice %6 {offsets = [1, 0, 0], sizes = [1, 16, 8], strides = [1, 1, 1]} : vector<4x16x8xf32> to vector<1x16x8xf32>
    %118 = vector.shape_cast %117 : vector<1x16x8xf32> to vector<16x8xf32>
    %119 = arith.mulf %118, %106 : vector<16x8xf32>
    %cst_43 = arith.constant dense<0.000000e+00> : vector<8xf32>
    %120 = vector.multi_reduction <add>, %119, %cst_43 [0] : vector<16x8xf32> to vector<8xf32>
    %121 = vector.shape_cast %120 : vector<8xf32> to vector<1x8xf32>
    %c9 = arith.constant 9 : index
    %c0_44 = arith.constant 0 : index
    %c0_45 = arith.constant 0 : index
    %122 = vector.load %arg7[%c9, %c0_44, %c0_45] : memref<16x16x8xf32, #tpu.memory_space<vmem>>, vector<1x16x8xf32>
    %123 = vector.shape_cast %122 : vector<1x16x8xf32> to vector<16x8xf32>
    %124 = vector.broadcast %121 : vector<1x8xf32> to vector<16x8xf32>
    %125 = arith.mulf %123, %124 : vector<16x8xf32>
    %126 = arith.addf %116, %125 : vector<16x8xf32>
    %127 = vector.extract_strided_slice %6 {offsets = [2, 0, 0], sizes = [1, 16, 8], strides = [1, 1, 1]} : vector<4x16x8xf32> to vector<1x16x8xf32>
    %128 = vector.shape_cast %127 : vector<1x16x8xf32> to vector<16x8xf32>
    %129 = arith.mulf %128, %106 : vector<16x8xf32>
    %cst_46 = arith.constant dense<0.000000e+00> : vector<8xf32>
    %130 = vector.multi_reduction <add>, %129, %cst_46 [0] : vector<16x8xf32> to vector<8xf32>
    %131 = vector.shape_cast %130 : vector<8xf32> to vector<1x8xf32>
    %c10 = arith.constant 10 : index
    %c0_47 = arith.constant 0 : index
    %c0_48 = arith.constant 0 : index
    %132 = vector.load %arg7[%c10, %c0_47, %c0_48] : memref<16x16x8xf32, #tpu.memory_space<vmem>>, vector<1x16x8xf32>
    %133 = vector.shape_cast %132 : vector<1x16x8xf32> to vector<16x8xf32>
    %134 = vector.broadcast %131 : vector<1x8xf32> to vector<16x8xf32>
    %135 = arith.mulf %133, %134 : vector<16x8xf32>
    %136 = arith.addf %126, %135 : vector<16x8xf32>
    %137 = vector.extract_strided_slice %6 {offsets = [3, 0, 0], sizes = [1, 16, 8], strides = [1, 1, 1]} : vector<4x16x8xf32> to vector<1x16x8xf32>
    %138 = vector.shape_cast %137 : vector<1x16x8xf32> to vector<16x8xf32>
    %139 = arith.mulf %138, %106 : vector<16x8xf32>
    %cst_49 = arith.constant dense<0.000000e+00> : vector<8xf32>
    %140 = vector.multi_reduction <add>, %139, %cst_49 [0] : vector<16x8xf32> to vector<8xf32>
    %141 = vector.shape_cast %140 : vector<8xf32> to vector<1x8xf32>
    %c11 = arith.constant 11 : index
    %c0_50 = arith.constant 0 : index
    %c0_51 = arith.constant 0 : index
    %142 = vector.load %arg7[%c11, %c0_50, %c0_51] : memref<16x16x8xf32, #tpu.memory_space<vmem>>, vector<1x16x8xf32>
    %143 = vector.shape_cast %142 : vector<1x16x8xf32> to vector<16x8xf32>
    %144 = vector.broadcast %141 : vector<1x8xf32> to vector<16x8xf32>
    %145 = arith.mulf %143, %144 : vector<16x8xf32>
    %146 = arith.addf %136, %145 : vector<16x8xf32>
    %147 = vector.extract_strided_slice %6 {offsets = [3, 0, 0], sizes = [1, 16, 8], strides = [1, 1, 1]} : vector<4x16x8xf32> to vector<1x16x8xf32>
    %148 = vector.shape_cast %147 : vector<1x16x8xf32> to vector<16x8xf32>
    %149 = vector.shape_cast %148 : vector<16x8xf32> to vector<16x1x8xf32>
    %150 = vector.broadcast %149 : vector<16x1x8xf32> to vector<16x16x8xf32>
    %151 = arith.mulf %7, %150 : vector<16x16x8xf32>
    %cst_52 = arith.constant dense<0.000000e+00> : vector<16x8xf32>
    %152 = vector.multi_reduction <add>, %151, %cst_52 [0] : vector<16x16x8xf32> to vector<16x8xf32>
    %153 = vector.extract_strided_slice %6 {offsets = [0, 0, 0], sizes = [1, 16, 8], strides = [1, 1, 1]} : vector<4x16x8xf32> to vector<1x16x8xf32>
    %154 = vector.shape_cast %153 : vector<1x16x8xf32> to vector<16x8xf32>
    %155 = arith.mulf %154, %152 : vector<16x8xf32>
    %cst_53 = arith.constant dense<0.000000e+00> : vector<8xf32>
    %156 = vector.multi_reduction <add>, %155, %cst_53 [0] : vector<16x8xf32> to vector<8xf32>
    %157 = vector.shape_cast %156 : vector<8xf32> to vector<1x8xf32>
    %c12 = arith.constant 12 : index
    %c0_54 = arith.constant 0 : index
    %c0_55 = arith.constant 0 : index
    %158 = vector.load %arg7[%c12, %c0_54, %c0_55] : memref<16x16x8xf32, #tpu.memory_space<vmem>>, vector<1x16x8xf32>
    %159 = vector.shape_cast %158 : vector<1x16x8xf32> to vector<16x8xf32>
    %160 = vector.broadcast %157 : vector<1x8xf32> to vector<16x8xf32>
    %161 = arith.mulf %159, %160 : vector<16x8xf32>
    %162 = arith.addf %146, %161 : vector<16x8xf32>
    %163 = vector.extract_strided_slice %6 {offsets = [1, 0, 0], sizes = [1, 16, 8], strides = [1, 1, 1]} : vector<4x16x8xf32> to vector<1x16x8xf32>
    %164 = vector.shape_cast %163 : vector<1x16x8xf32> to vector<16x8xf32>
    %165 = arith.mulf %164, %152 : vector<16x8xf32>
    %cst_56 = arith.constant dense<0.000000e+00> : vector<8xf32>
    %166 = vector.multi_reduction <add>, %165, %cst_56 [0] : vector<16x8xf32> to vector<8xf32>
    %167 = vector.shape_cast %166 : vector<8xf32> to vector<1x8xf32>
    %c13 = arith.constant 13 : index
    %c0_57 = arith.constant 0 : index
    %c0_58 = arith.constant 0 : index
    %168 = vector.load %arg7[%c13, %c0_57, %c0_58] : memref<16x16x8xf32, #tpu.memory_space<vmem>>, vector<1x16x8xf32>
    %169 = vector.shape_cast %168 : vector<1x16x8xf32> to vector<16x8xf32>
    %170 = vector.broadcast %167 : vector<1x8xf32> to vector<16x8xf32>
    %171 = arith.mulf %169, %170 : vector<16x8xf32>
    %172 = arith.addf %162, %171 : vector<16x8xf32>
    %173 = vector.extract_strided_slice %6 {offsets = [2, 0, 0], sizes = [1, 16, 8], strides = [1, 1, 1]} : vector<4x16x8xf32> to vector<1x16x8xf32>
    %174 = vector.shape_cast %173 : vector<1x16x8xf32> to vector<16x8xf32>
    %175 = arith.mulf %174, %152 : vector<16x8xf32>
    %cst_59 = arith.constant dense<0.000000e+00> : vector<8xf32>
    %176 = vector.multi_reduction <add>, %175, %cst_59 [0] : vector<16x8xf32> to vector<8xf32>
    %177 = vector.shape_cast %176 : vector<8xf32> to vector<1x8xf32>
    %c14 = arith.constant 14 : index
    %c0_60 = arith.constant 0 : index
    %c0_61 = arith.constant 0 : index
    %178 = vector.load %arg7[%c14, %c0_60, %c0_61] : memref<16x16x8xf32, #tpu.memory_space<vmem>>, vector<1x16x8xf32>
    %179 = vector.shape_cast %178 : vector<1x16x8xf32> to vector<16x8xf32>
    %180 = vector.broadcast %177 : vector<1x8xf32> to vector<16x8xf32>
    %181 = arith.mulf %179, %180 : vector<16x8xf32>
    %182 = arith.addf %172, %181 : vector<16x8xf32>
    %183 = vector.extract_strided_slice %6 {offsets = [3, 0, 0], sizes = [1, 16, 8], strides = [1, 1, 1]} : vector<4x16x8xf32> to vector<1x16x8xf32>
    %184 = vector.shape_cast %183 : vector<1x16x8xf32> to vector<16x8xf32>
    %185 = arith.mulf %184, %152 : vector<16x8xf32>
    %cst_62 = arith.constant dense<0.000000e+00> : vector<8xf32>
    %186 = vector.multi_reduction <add>, %185, %cst_62 [0] : vector<16x8xf32> to vector<8xf32>
    %187 = vector.shape_cast %186 : vector<8xf32> to vector<1x8xf32>
    %c15 = arith.constant 15 : index
    %c0_63 = arith.constant 0 : index
    %c0_64 = arith.constant 0 : index
    %188 = vector.load %arg7[%c15, %c0_63, %c0_64] : memref<16x16x8xf32, #tpu.memory_space<vmem>>, vector<1x16x8xf32>
    %189 = vector.shape_cast %188 : vector<1x16x8xf32> to vector<16x8xf32>
    %190 = vector.broadcast %187 : vector<1x8xf32> to vector<16x8xf32>
    %191 = arith.mulf %189, %190 : vector<16x8xf32>
    %192 = arith.addf %182, %191 : vector<16x8xf32>
    %cst_65 = arith.constant 5.000000e-01 : f32
    %193 = vector.broadcast %cst_65 : f32 to vector<16x8xf32>
    %194 = arith.mulf %193, %192 : vector<16x8xf32>
    %195 = arith.subf %5, %194 : vector<16x8xf32>
    %c0_66 = arith.constant 0 : index
    %c0_67 = arith.constant 0 : index
    %c0_68 = arith.constant 0 : index
    %196 = vector.load %arg6[%c0_66, %c0_67, %c0_68] : memref<16x16x8xf32, #tpu.memory_space<vmem>>, vector<16x16x8xf32>
    %197 = vector.shape_cast %195 : vector<16x8xf32> to vector<16x1x8xf32>
    %198 = vector.broadcast %197 : vector<16x1x8xf32> to vector<16x16x8xf32>
    %199 = arith.mulf %196, %198 : vector<16x16x8xf32>
    %cst_69 = arith.constant dense<0.000000e+00> : vector<16x8xf32>
    %200 = vector.multi_reduction <add>, %199, %cst_69 [0] : vector<16x16x8xf32> to vector<16x8xf32>
    %201 = arith.subf %4, %3 : vector<16x8xf32>
    %202 = arith.mulf %201, %201 : vector<16x8xf32>
    %cst_70 = arith.constant dense<0.000000e+00> : vector<8xf32>
    %203 = vector.multi_reduction <add>, %202, %cst_70 [0] : vector<16x8xf32> to vector<8xf32>
    %204 = vector.shape_cast %203 : vector<8xf32> to vector<1x8xf32>
    %205 = arith.mulf %6, %6 : vector<4x16x8xf32>
    %cst_71 = arith.constant dense<0.000000e+00> : vector<16x8xf32>
    %206 = vector.multi_reduction <add>, %205, %cst_71 [0] : vector<4x16x8xf32> to vector<16x8xf32>
    %cst_72 = arith.constant dense<0.000000e+00> : vector<8xf32>
    %207 = vector.multi_reduction <add>, %206, %cst_72 [0] : vector<16x8xf32> to vector<8xf32>
    %208 = vector.shape_cast %207 : vector<8xf32> to vector<1x8xf32>
    %209 = arith.mulf %200, %200 : vector<16x8xf32>
    %cst_73 = arith.constant dense<0.000000e+00> : vector<8xf32>
    %210 = vector.multi_reduction <add>, %209, %cst_73 [0] : vector<16x8xf32> to vector<8xf32>
    %211 = vector.shape_cast %210 : vector<8xf32> to vector<1x8xf32>
    %c0_74 = arith.constant 0 : index
    %c0_75 = arith.constant 0 : index
    %c0_76 = arith.constant 0 : index
    %212 = vector.load %arg10[%c0_74, %c0_75, %c0_76] : memref<1x1x8xf32, #tpu.memory_space<vmem>>, vector<1x1x8xf32>
    %cst_77 = arith.constant 7.812500e-03 : f32
    %213 = vector.broadcast %cst_77 : f32 to vector<1x8xf32>
    %214 = arith.mulf %213, %204 : vector<1x8xf32>
    %cst_78 = arith.constant 0.0874999985 : f32
    %215 = vector.broadcast %cst_78 : f32 to vector<1x8xf32>
    %216 = arith.mulf %215, %208 : vector<1x8xf32>
    %217 = arith.addf %214, %216 : vector<1x8xf32>
    %cst_79 = arith.constant 1.625000e-01 : f32
    %218 = vector.broadcast %cst_79 : f32 to vector<1x8xf32>
    %219 = arith.mulf %218, %211 : vector<1x8xf32>
    %220 = arith.addf %217, %219 : vector<1x8xf32>
    %221 = vector.shape_cast %220 : vector<1x8xf32> to vector<1x1x8xf32>
    %222 = arith.addf %212, %221 : vector<1x1x8xf32>
    %c0_80 = arith.constant 0 : index
    %c0_81 = arith.constant 0 : index
    %c0_82 = arith.constant 0 : index
    %223 = vector.load %arg10[%c0_80, %c0_81, %c0_82] : memref<1x1x8xf32, #tpu.memory_space<vmem>>, vector<1x1x8xf32>
    tpu.vector_store %arg10[%c0_80, %c0_81, %c0_82], %222 {strides = array<i32>} : memref<1x1x8xf32, #tpu.memory_space<vmem>>, vector<1x1x8xf32>,
    %c0_83 = arith.constant 0 : index
    %c0_84 = arith.constant 0 : index
    %224 = vector.load %arg8[%c0_83, %c0_84] : memref<8x256xf32, #tpu.memory_space<vmem>>, vector<8x256xf32>
    %c0_85 = arith.constant 0 : index
    %c0_86 = arith.constant 0 : index
    %225 = vector.load %arg9[%c0_85, %c0_86] : memref<8x256xf32, #tpu.memory_space<vmem>>, vector<8x256xf32>
    %226 = arith.subf %224, %225 : vector<8x256xf32>
    %c0_87 = arith.constant 0 : index
    %c0_88 = arith.constant 0 : index
    %c0_89 = arith.constant 0 : index
    %227 = vector.load %arg11[%c0_87, %c0_88, %c0_89] : memref<1x1x256xf32, #tpu.memory_space<vmem>>, vector<1x1x256xf32>
    %228 = arith.mulf %226, %226 : vector<8x256xf32>
    %cst_90 = arith.constant dense<0.000000e+00> : vector<256xf32>
    %229 = vector.multi_reduction <add>, %228, %cst_90 [0] : vector<8x256xf32> to vector<256xf32>
    %230 = vector.shape_cast %229 : vector<256xf32> to vector<1x256xf32>
    %cst_91 = arith.constant 1.125000e-01 : f32
    %231 = vector.broadcast %cst_91 : f32 to vector<1x256xf32>
    %232 = arith.mulf %231, %230 : vector<1x256xf32>
    %233 = vector.shape_cast %232 : vector<1x256xf32> to vector<1x1x256xf32>
    %234 = arith.addf %227, %233 : vector<1x1x256xf32>
    %c0_92 = arith.constant 0 : index
    %c0_93 = arith.constant 0 : index
    %c0_94 = arith.constant 0 : index
    %235 = vector.load %arg11[%c0_92, %c0_93, %c0_94] : memref<1x1x256xf32, #tpu.memory_space<vmem>>, vector<1x1x256xf32>
    tpu.vector_store %arg11[%c0_92, %c0_93, %c0_94], %234 {strides = array<i32>} : memref<1x1x256xf32, #tpu.memory_space<vmem>>, vector<1x1x256xf32>,
    return
  }
  func.func @transform_0(%arg0: i32) -> (i32, i32) {
    %c0_i32 = arith.constant 0 : i32
    %c0_i32_0 = arith.constant 0 : i32
    return %c0_i32, %arg0 : i32, i32
  }
  func.func @transform_1(%arg0: i32) -> (i32, i32) {
    %c0_i32 = arith.constant 0 : i32
    %c0_i32_0 = arith.constant 0 : i32
    return %c0_i32, %arg0 : i32, i32
  }
  func.func @transform_2(%arg0: i32) -> (i32, i32) {
    %c0_i32 = arith.constant 0 : i32
    %c0_i32_0 = arith.constant 0 : i32
    return %c0_i32, %arg0 : i32, i32
  }
  func.func @transform_3(%arg0: i32) -> (i32, i32, i32) {
    %c0_i32 = arith.constant 0 : i32
    %c0_i32_0 = arith.constant 0 : i32
    %c0_i32_1 = arith.constant 0 : i32
    return %c0_i32, %c0_i32_0, %arg0 : i32, i32, i32
  }
  func.func @transform_4(%arg0: i32) -> (i32, i32, i32) {
    %c0_i32 = arith.constant 0 : i32
    %c0_i32_0 = arith.constant 0 : i32
    %c0_i32_1 = arith.constant 0 : i32
    return %c0_i32, %c0_i32_0, %arg0 : i32, i32, i32
  }
  func.func @transform_5(%arg0: i32) -> (i32, i32, i32) {
    %c0_i32 = arith.constant 0 : i32
    %c0_i32_0 = arith.constant 0 : i32
    %c0_i32_1 = arith.constant 0 : i32
    return %c0_i32, %c0_i32_0, %arg0 : i32, i32, i32
  }
  func.func @transform_6(%arg0: i32) -> (i32, i32, i32) {
    %c0_i32 = arith.constant 0 : i32
    %c0_i32_0 = arith.constant 0 : i32
    %c0_i32_1 = arith.constant 0 : i32
    return %c0_i32, %c0_i32_0, %arg0 : i32, i32, i32
  }
  func.func @transform_7(%arg0: i32) -> (i32, i32) {
    %c0_i32 = arith.constant 0 : i32
    %c0_i32_0 = arith.constant 0 : i32
    return %arg0, %c0_i32 : i32, i32
  }
  func.func @transform_8(%arg0: i32) -> (i32, i32) {
    %c0_i32 = arith.constant 0 : i32
    %c0_i32_0 = arith.constant 0 : i32
    return %arg0, %c0_i32 : i32, i32
  }
  func.func @transform_9(%arg0: i32) -> (i32, i32, i32) {
    %c0_i32 = arith.constant 0 : i32
    %c0_i32_0 = arith.constant 0 : i32
    %c0_i32_1 = arith.constant 0 : i32
    %c0_i32_2 = arith.constant 0 : i32
    return %c0_i32, %c0_i32_0, %c0_i32_1 : i32, i32, i32
  }
  func.func @transform_10(%arg0: i32) -> (i32, i32, i32) {
    %c0_i32 = arith.constant 0 : i32
    %c0_i32_0 = arith.constant 0 : i32
    %c0_i32_1 = arith.constant 0 : i32
    %c0_i32_2 = arith.constant 0 : i32
    return %c0_i32, %c0_i32_0, %c0_i32_1 : i32, i32, i32
  }
}

</mosaic_0001>

<llo_original>
// kernel: tpu_custom_call.1
$region0: #{tpu_custom_call.1}
  #allocation0 [shape = 'u32[]', space=smem, size = 0x4, offset = 0x4, fixed_abs, tag = 'smem constant byte address 0x4 - core index']
  #allocation1 [shape = 'u32[72,128]{1,0:T(1,128)}', space=vmem, size = 0x9000, scoped, tag = 'internal scratch']
  %s0 = inlined_call_operand.vmem [shape: f32[16,8], index: 0, kind: input, shape index: {}]
  %s1 = inlined_call_operand.vmem [shape: f32[16,8], index: 1, kind: input, shape index: {}]
  %s2 = inlined_call_operand.vmem [shape: f32[16,8], index: 2, kind: input, shape index: {}]
  %s3 = inlined_call_operand.vmem [shape: f32[4,16,8], index: 3, kind: input, shape index: {}]
  %s4 = inlined_call_operand.vmem [shape: f32[16,16,8], index: 4, kind: input, shape index: {}]
  %s5 = inlined_call_operand.vmem [shape: f32[16,16,8], index: 5, kind: input, shape index: {}]
  %s6 = inlined_call_operand.vmem [shape: f32[16,16,8], index: 6, kind: input, shape index: {}]
  %s7 = inlined_call_operand.vmem [shape: f32[8,256], index: 7, kind: input, shape index: {}]
  %s8 = inlined_call_operand.vmem [shape: f32[8,256], index: 8, kind: input, shape index: {}]
  %s9 = inlined_call_operand.hbm [shape: f32[1,1,8], index: 9, kind: output, shape index: {0}]
  %s10 = inlined_call_operand.hbm [shape: f32[1,1,256], index: 10, kind: output, shape index: {1}]
  %11 = xla_tuple %s9, %s10
  %s12 = sld [smem:[#allocation0]]
  $region58: #{tpu_custom_call.1} parent=0
    _
  %s14 = ssub.s32 1, %s12
  %s15 = scalar_select 0, %s14, %s12
  $region1: #{tpu_custom_call.1} parent=0
    #allocation2 [shape = 'u8[512]{0}', space=vmem, size = 0x400, scoped, tag = 'output window, operand 0, single buffered']
    #allocation3 [shape = 's32[1]{0}', space=sflag, size = 0x4, scoped, tag = 'scoped memory for tpu_custom_call.1']
    #allocation4 [shape = 'u8[1024]{0}', space=vmem, size = 0x400, scoped, tag = 'output window, operand 1, single buffered']
    #allocation5 [shape = 's32[1]{0}', space=sflag, size = 0x4, scoped, tag = 'scoped memory for tpu_custom_call.1']
    %16 = vsyncpa [#allocation3], 0
    %17 = vsyncpa [#allocation5], 0
    // Predicated region
    $region2: #{tpu_custom_call.1} parent=1 // pred_check
      _
    $region3: #{tpu_custom_call.1} parent=1 // pred_check_branch
      %19 = sbr.rel (0) target = $region5
    $region4: #{tpu_custom_call.1} parent=1 // pred_region
      _
    $region5: #{tpu_custom_call.1} parent=1 // pred_fallthru
      _
    // Predicated region
    $region6: #{tpu_custom_call.1} parent=1 // pred_check
      _
    $region7: #{tpu_custom_call.1} parent=1 // pred_check_branch
      %21 = sbr.rel (0) target = $region9
    $region8: #{tpu_custom_call.1} parent=1 // pred_region
      _
    $region9: #{tpu_custom_call.1} parent=1 // pred_fallthru
      _
    // Predicated region
    $region10: #{tpu_custom_call.1} parent=1 // pred_check
      _
    $region11: #{tpu_custom_call.1} parent=1 // pred_check_branch
      %23 = sbr.rel (0) target = $region13
    $region12: #{tpu_custom_call.1} parent=1 // pred_region
      _
    $region13: #{tpu_custom_call.1} parent=1 // pred_fallthru
      _
    // Predicated region
    $region14: #{tpu_custom_call.1} parent=1 // pred_check
      _
    $region15: #{tpu_custom_call.1} parent=1 // pred_check_branch
      %25 = sbr.rel (0) target = $region17
    $region16: #{tpu_custom_call.1} parent=1 // pred_region
      _
    $region17: #{tpu_custom_call.1} parent=1 // pred_fallthru
      _
    // Predicated region
    $region18: #{tpu_custom_call.1} parent=1 // pred_check
      _
    $region19: #{tpu_custom_call.1} parent=1 // pred_check_branch
      %27 = sbr.rel (0) target = $region21
    $region20: #{tpu_custom_call.1} parent=1 // pred_region
      _
    $region21: #{tpu_custom_call.1} parent=1 // pred_fallthru
      _
    // Predicated region
    $region22: #{tpu_custom_call.1} parent=1 // pred_check
      _
    $region23: #{tpu_custom_call.1} parent=1 // pred_check_branch
      %29 = sbr.rel (0) target = $region25
    $region24: #{tpu_custom_call.1} parent=1 // pred_region
      _
    $region25: #{tpu_custom_call.1} parent=1 // pred_fallthru
      _
    // Predicated region
    $region26: #{tpu_custom_call.1} parent=1 // pred_check
      _
    $region27: #{tpu_custom_call.1} parent=1 // pred_check_branch
      %31 = sbr.rel (0) target = $region29
    $region28: #{tpu_custom_call.1} parent=1 // pred_region
      _
    $region29: #{tpu_custom_call.1} parent=1 // pred_fallthru
      _
    // Predicated region
    $region30: #{tpu_custom_call.1} parent=1 // pred_check
      _
    $region31: #{tpu_custom_call.1} parent=1 // pred_check_branch
      %33 = sbr.rel (0) target = $region33
    $region32: #{tpu_custom_call.1} parent=1 // pred_region
      _
    $region33: #{tpu_custom_call.1} parent=1 // pred_fallthru
      _
    // Predicated region
    $region34: #{tpu_custom_call.1} parent=1 // pred_check
      _
    $region35: #{tpu_custom_call.1} parent=1 // pred_check_branch
      %35 = sbr.rel (0) target = $region37
    $region36: #{tpu_custom_call.1} parent=1 // pred_region
      _
    $region37: #{tpu_custom_call.1} parent=1 // pred_fallthru
      _
    %p36 = scmp.eq.s32.totalorder 0, 0
    // Predicated region
    $region38: #{tpu_custom_call.1} parent=1 // pred_check
      %p37 = pneg %p36
    $region39: #{tpu_custom_call.1} parent=1 // pred_check_branch
      %39 = sbr.rel (%p37) target = $region41
    $region40: #{tpu_custom_call.1} parent=1 // pred_region
      %vm40 = vcmask 57344
      %41 = vst.msk [vmem:[#allocation2] sm:$0x1] %vm40, 0.0
      %v42 = vlaneseq
      %vm43 = vcmp.ge.s32.totalorder %v42, 0
      %vm44 = vcmp.lt.s32.totalorder %v42, 256
      %vm45 = vmand %vm43, %vm44
      %46 = vst.msk [vmem:[#allocation4] sm:$0x3] %vm45, 0.0
    $region41: #{tpu_custom_call.1} parent=1 // pred_fallthru
      _
    %v47 = vld [vmem:[%s0] sm:$0xff]
    %v48 = vld [vmem:[%s0 + $0x8] sm:$0xff]
    %v49 = vld [vmem:[%s1] sm:$0xff]
    %v50 = vld [vmem:[%s1 + $0x8] sm:$0xff]
    %v51 = vld [vmem:[%s2] sm:$0xff]
    %v52 = vld [vmem:[%s2 + $0x8] sm:$0xff]
    %v53 = vld [vmem:[%s3] sm:$0xff]
    %v54 = vld [vmem:[%s3 + $0x8] sm:$0xff]
    %v55 = vld [vmem:[%s3 + $0x10] sm:$0xff]
    %v56 = vld [vmem:[%s3 + $0x18] sm:$0xff]
    %v57 = vld [vmem:[%s3 + $0x20] sm:$0xff]
    %v58 = vld [vmem:[%s3 + $0x28] sm:$0xff]
    %v59 = vld [vmem:[%s3 + $0x30] sm:$0xff]
    %v60 = vld [vmem:[%s3 + $0x38] sm:$0xff]
    %v61 = vld [vmem:[%s4] sm:$0xff]
    %v62 = vld [vmem:[%s4 + $0x8] sm:$0xff]
    %v63 = vld [vmem:[%s4 + $0x10] sm:$0xff]
    %v64 = vld [vmem:[%s4 + $0x18] sm:$0xff]
    %v65 = vld [vmem:[%s4 + $0x20] sm:$0xff]
    %v66 = vld [vmem:[%s4 + $0x28] sm:$0xff]
    %v67 = vld [vmem:[%s4 + $0x30] sm:$0xff]
    %v68 = vld [vmem:[%s4 + $0x38] sm:$0xff]
    %v69 = vld [vmem:[%s4 + $0x40] sm:$0xff]
    %v70 = vld [vmem:[%s4 + $0x48] sm:$0xff]
    %v71 = vld [vmem:[%s4 + $0x50] sm:$0xff]
    %v72 = vld [vmem:[%s4 + $0x58] sm:$0xff]
    %v73 = vld [vmem:[%s4 + $0x60] sm:$0xff]
    %v74 = vld [vmem:[%s4 + $0x68] sm:$0xff]
    %v75 = vld [vmem:[%s4 + $0x70] sm:$0xff]
    %v76 = vld [vmem:[%s4 + $0x78] sm:$0xff]
    %v77 = vld [vmem:[%s4 + $0x80] sm:$0xff]
    %v78 = vld [vmem:[%s4 + $0x88] sm:$0xff]
    %v79 = vld [vmem:[%s4 + $0x90] sm:$0xff]
    %v80 = vld [vmem:[%s4 + $0x98] sm:$0xff]
    %v81 = vld [vmem:[%s4 + $0xa0] sm:$0xff]
    %v82 = vld [vmem:[%s4 + $0xa8] sm:$0xff]
    %v83 = vld [vmem:[%s4 + $0xb0] sm:$0xff]
    %v84 = vld [vmem:[%s4 + $0xb8] sm:$0xff]
    %v85 = vld [vmem:[%s4 + $0xc0] sm:$0xff]
    %v86 = vld [vmem:[%s4 + $0xc8] sm:$0xff]
    %v87 = vld [vmem:[%s4 + $0xd0] sm:$0xff]
    %v88 = vld [vmem:[%s4 + $0xd8] sm:$0xff]
    %v89 = vld [vmem:[%s4 + $0xe0] sm:$0xff]
    %v90 = vld [vmem:[%s4 + $0xe8] sm:$0xff]
    %v91 = vld [vmem:[%s4 + $0xf0] sm:$0xff]
    %v92 = vld [vmem:[%s4 + $0xf8] sm:$0xff]
    %v95 = vrot.slane %v53, 1
    %v96 = vrot.slane %v53, 2
    %v97 = vrot.slane %v53, 3
    %v98 = vrot.slane %v53, 4
    %v99 = vrot.slane %v53, 5
    %v100 = vrot.slane %v53, 6
    %v101 = vrot.slane %v53, 7
    %v102 = vrot.slane %v54, 1
    %v103 = vrot.slane %v54, 2
    %v104 = vrot.slane %v54, 3
    %v105 = vrot.slane %v54, 4
    %v106 = vrot.slane %v54, 5
    %v107 = vrot.slane %v54, 6
    %v108 = vrot.slane %v54, 7
    %v109 = vperm.slane %v53, 0
    %v110 = vperm.slane %v95, 0
    %v111 = vperm.slane %v96, 0
    %v112 = vperm.slane %v97, 0
    %v113 = vperm.slane %v98, 0
    %v114 = vperm.slane %v99, 0
    %v115 = vperm.slane %v100, 0
    %v116 = vperm.slane %v101, 0
    %v117 = vperm.slane %v54, 0
    %v118 = vperm.slane %v102, 0
    %v119 = vperm.slane %v103, 0
    %v120 = vperm.slane %v104, 0
    %v121 = vperm.slane %v105, 0
    %v122 = vperm.slane %v106, 0
    %v123 = vperm.slane %v107, 0
    %v124 = vperm.slane %v108, 0
    %v141 = vmul.f32 %v61, %v109
    %v142 = vmul.f32 %v62, %v109
    %v143 = vmul.f32 %v63, %v110
    %v144 = vmul.f32 %v64, %v110
    %v145 = vmul.f32 %v65, %v111
    %v146 = vmul.f32 %v66, %v111
    %v147 = vmul.f32 %v67, %v112
    %v148 = vmul.f32 %v68, %v112
    %v149 = vmul.f32 %v69, %v113
    %v150 = vmul.f32 %v70, %v113
    %v151 = vmul.f32 %v71, %v114
    %v152 = vmul.f32 %v72, %v114
    %v153 = vmul.f32 %v73, %v115
    %v154 = vmul.f32 %v74, %v115
    %v155 = vmul.f32 %v75, %v116
    %v156 = vmul.f32 %v76, %v116
    %v157 = vmul.f32 %v77, %v117
    %v158 = vmul.f32 %v78, %v117
    %v159 = vmul.f32 %v79, %v118
    %v160 = vmul.f32 %v80, %v118
    %v161 = vmul.f32 %v81, %v119
    %v162 = vmul.f32 %v82, %v119
    %v163 = vmul.f32 %v83, %v120
    %v164 = vmul.f32 %v84, %v120
    %v165 = vmul.f32 %v85, %v121
    %v166 = vmul.f32 %v86, %v121
    %v167 = vmul.f32 %v87, %v122
    %v168 = vmul.f32 %v88, %v122
    %v169 = vmul.f32 %v89, %v123
    %v170 = vmul.f32 %v90, %v123
    %v171 = vmul.f32 %v91, %v124
    %v172 = vmul.f32 %v92, %v124
    %vm173 = vcmask 64512
    %v174 = vsel %vm173, %v141, 0.0
    %v175 = vsel %vm173, %v143, 0.0
    %v176 = vadd.f32 %v174, %v175
    %v177 = vsel %vm173, %v145, 0.0
    %v178 = vadd.f32 %v176, %v177
    %v179 = vsel %vm173, %v147, 0.0
    %v180 = vadd.f32 %v178, %v179
    %v181 = vsel %vm173, %v149, 0.0
    %v182 = vadd.f32 %v180, %v181
    %v183 = vsel %vm173, %v151, 0.0
    %v184 = vadd.f32 %v182, %v183
    %v185 = vsel %vm173, %v153, 0.0
    %v186 = vadd.f32 %v184, %v185
    %v187 = vsel %vm173, %v155, 0.0
    %v188 = vadd.f32 %v186, %v187
    %v189 = vsel %vm173, %v157, 0.0
    %v190 = vadd.f32 %v188, %v189
    %v191 = vsel %vm173, %v159, 0.0
    %v192 = vadd.f32 %v190, %v191
    %v193 = vsel %vm173, %v161, 0.0
    %v194 = vadd.f32 %v192, %v193
    %v195 = vsel %vm173, %v163, 0.0
    %v196 = vadd.f32 %v194, %v195
    %v197 = vsel %vm173, %v165, 0.0
    %v198 = vadd.f32 %v196, %v197
    %v199 = vsel %vm173, %v167, 0.0
    %v200 = vadd.f32 %v198, %v199
    %v201 = vsel %vm173, %v169, 0.0
    %v202 = vadd.f32 %v200, %v201
    %v203 = vsel %vm173, %v171, 0.0
    %v204 = vadd.f32 %v202, %v203
    %v205 = vsel %vm173, %v142, 0.0
    %v206 = vsel %vm173, %v144, 0.0
    %v207 = vadd.f32 %v205, %v206
    %v208 = vsel %vm173, %v146, 0.0
    %v209 = vadd.f32 %v207, %v208
    %v210 = vsel %vm173, %v148, 0.0
    %v211 = vadd.f32 %v209, %v210
    %v212 = vsel %vm173, %v150, 0.0
    %v213 = vadd.f32 %v211, %v212
    %v214 = vsel %vm173, %v152, 0.0
    %v215 = vadd.f32 %v213, %v214
    %v216 = vsel %vm173, %v154, 0.0
    %v217 = vadd.f32 %v215, %v216
    %v218 = vsel %vm173, %v156, 0.0
    %v219 = vadd.f32 %v217, %v218
    %v220 = vsel %vm173, %v158, 0.0
    %v221 = vadd.f32 %v219, %v220
    %v222 = vsel %vm173, %v160, 0.0
    %v223 = vadd.f32 %v221, %v222
    %v224 = vsel %vm173, %v162, 0.0
    %v225 = vadd.f32 %v223, %v224
    %v226 = vsel %vm173, %v164, 0.0
    %v227 = vadd.f32 %v225, %v226
    %v228 = vsel %vm173, %v166, 0.0
    %v229 = vadd.f32 %v227, %v228
    %v230 = vsel %vm173, %v168, 0.0
    %v231 = vadd.f32 %v229, %v230
    %v232 = vsel %vm173, %v170, 0.0
    %v233 = vadd.f32 %v231, %v232
    %v234 = vsel %vm173, %v172, 0.0
    %v235 = vadd.f32 %v233, %v234
    %v236 = vmul.f32 %v53, %v204
    %v237 = vmul.f32 %v54, %v235
    %v238 = vsel %vm173, %v236, 0.0
    %v239 = vsel %vm173, %v237, 0.0
    %v240 = vadd.f32 %v238, %v239
    %v241 = vrot.slane %v240, 4
    %v242 = vadd.f32 %v240, %v241
    %v243 = vrot.slane %v242, 2
    %v244 = vadd.f32 %v242, %v243
    %v245 = vrot.slane %v244, 1
    %v246 = vadd.f32 %v244, %v245
    %v247 = vld [vmem:[%s6] sm:$0xff]
    %v248 = vld [vmem:[%s6 + $0x8] sm:$0xff]
    %v249 = vmul.f32 %v247, %v246
    %v250 = vmul.f32 %v248, %v246
    %v251 = vadd.f32 %v249, 0.0
    %v252 = vadd.f32 %v250, 0.0
    %v253 = vmul.f32 %v55, %v204
    %v254 = vmul.f32 %v56, %v235
    %v255 = vsel %vm173, %v253, 0.0
    %v256 = vsel %vm173, %v254, 0.0
    %v257 = vadd.f32 %v255, %v256
    %v258 = vrot.slane %v257, 4
    %v259 = vadd.f32 %v257, %v258
    %v260 = vrot.slane %v259, 2
    %v261 = vadd.f32 %v259, %v260
    %v262 = vrot.slane %v261, 1
    %v263 = vadd.f32 %v261, %v262
    %s264 = scalar_lea.vmem %s6, 16
    %v265 = vld [vmem:[%s264] sm:$0xff]
    %v266 = vld [vmem:[%s264 + $0x8] sm:$0xff]
    %v267 = vmul.f32 %v265, %v263
    %v268 = vmul.f32 %v266, %v263
    %v269 = vadd.f32 %v251, %v267
    %v270 = vadd.f32 %v252, %v268
    %v271 = vmul.f32 %v57, %v204
    %v272 = vmul.f32 %v58, %v235
    %v273 = vsel %vm173, %v271, 0.0
    %v274 = vsel %vm173, %v272, 0.0
    %v275 = vadd.f32 %v273, %v274
    %v276 = vrot.slane %v275, 4
    %v277 = vadd.f32 %v275, %v276
    %v278 = vrot.slane %v277, 2
    %v279 = vadd.f32 %v277, %v278
    %v280 = vrot.slane %v279, 1
    %v281 = vadd.f32 %v279, %v280
    %s282 = scalar_lea.vmem %s6, 32
    %v283 = vld [vmem:[%s282] sm:$0xff]
    %v284 = vld [vmem:[%s282 + $0x8] sm:$0xff]
    %v285 = vmul.f32 %v283, %v281
    %v286 = vmul.f32 %v284, %v281
    %v287 = vadd.f32 %v269, %v285
    %v288 = vadd.f32 %v270, %v286
    %v289 = vmul.f32 %v59, %v204
    %v290 = vmul.f32 %v60, %v235
    %v291 = vsel %vm173, %v289, 0.0
    %v292 = vsel %vm173, %v290, 0.0
    %v293 = vadd.f32 %v291, %v292
    %v294 = vrot.slane %v293, 4
    %v295 = vadd.f32 %v293, %v294
    %v296 = vrot.slane %v295, 2
    %v297 = vadd.f32 %v295, %v296
    %v298 = vrot.slane %v297, 1
    %v299 = vadd.f32 %v297, %v298
    %s300 = scalar_lea.vmem %s6, 48
    %v301 = vld [vmem:[%s300] sm:$0xff]
    %v302 = vld [vmem:[%s300 + $0x8] sm:$0xff]
    %v303 = vmul.f32 %v301, %v299
    %v304 = vmul.f32 %v302, %v299
    %v305 = vadd.f32 %v287, %v303
    %v306 = vadd.f32 %v288, %v304
    %v309 = vrot.slane %v55, 1
    %v310 = vrot.slane %v55, 2
    %v311 = vrot.slane %v55, 3
    %v312 = vrot.slane %v55, 4
    %v313 = vrot.slane %v55, 5
    %v314 = vrot.slane %v55, 6
    %v315 = vrot.slane %v55, 7
    %v316 = vrot.slane %v56, 1
    %v317 = vrot.slane %v56, 2
    %v318 = vrot.slane %v56, 3
    %v319 = vrot.slane %v56, 4
    %v320 = vrot.slane %v56, 5
    %v321 = vrot.slane %v56, 6
    %v322 = vrot.slane %v56, 7
    %v323 = vperm.slane %v55, 0
    %v324 = vperm.slane %v309, 0
    %v325 = vperm.slane %v310, 0
    %v326 = vperm.slane %v311, 0
    %v327 = vperm.slane %v312, 0
    %v328 = vperm.slane %v313, 0
    %v329 = vperm.slane %v314, 0
    %v330 = vperm.slane %v315, 0
    %v331 = vperm.slane %v56, 0
    %v332 = vperm.slane %v316, 0
    %v333 = vperm.slane %v317, 0
    %v334 = vperm.slane %v318, 0
    %v335 = vperm.slane %v319, 0
    %v336 = vperm.slane %v320, 0
    %v337 = vperm.slane %v321, 0
    %v338 = vperm.slane %v322, 0
    %v355 = vmul.f32 %v61, %v323
    %v356 = vmul.f32 %v62, %v323
    %v357 = vmul.f32 %v63, %v324
    %v358 = vmul.f32 %v64, %v324
    %v359 = vmul.f32 %v65, %v325
    %v360 = vmul.f32 %v66, %v325
    %v361 = vmul.f32 %v67, %v326
    %v362 = vmul.f32 %v68, %v326
    %v363 = vmul.f32 %v69, %v327
    %v364 = vmul.f32 %v70, %v327
    %v365 = vmul.f32 %v71, %v328
    %v366 = vmul.f32 %v72, %v328
    %v367 = vmul.f32 %v73, %v329
    %v368 = vmul.f32 %v74, %v329
    %v369 = vmul.f32 %v75, %v330
    %v370 = vmul.f32 %v76, %v330
    %v371 = vmul.f32 %v77, %v331
    %v372 = vmul.f32 %v78, %v331
    %v373 = vmul.f32 %v79, %v332
    %v374 = vmul.f32 %v80, %v332
    %v375 = vmul.f32 %v81, %v333
    %v376 = vmul.f32 %v82, %v333
    %v377 = vmul.f32 %v83, %v334
    %v378 = vmul.f32 %v84, %v334
    %v379 = vmul.f32 %v85, %v335
    %v380 = vmul.f32 %v86, %v335
    %v381 = vmul.f32 %v87, %v336
    %v382 = vmul.f32 %v88, %v336
    %v383 = vmul.f32 %v89, %v337
    %v384 = vmul.f32 %v90, %v337
    %v385 = vmul.f32 %v91, %v338
    %v386 = vmul.f32 %v92, %v338
    %v387 = vsel %vm173, %v355, 0.0
    %v388 = vsel %vm173, %v357, 0.0
    %v389 = vadd.f32 %v387, %v388
    %v390 = vsel %vm173, %v359, 0.0
    %v391 = vadd.f32 %v389, %v390
    %v392 = vsel %vm173, %v361, 0.0
    %v393 = vadd.f32 %v391, %v392
    %v394 = vsel %vm173, %v363, 0.0
    %v395 = vadd.f32 %v393, %v394
    %v396 = vsel %vm173, %v365, 0.0
    %v397 = vadd.f32 %v395, %v396
    %v398 = vsel %vm173, %v367, 0.0
    %v399 = vadd.f32 %v397, %v398
    %v400 = vsel %vm173, %v369, 0.0
    %v401 = vadd.f32 %v399, %v400
    %v402 = vsel %vm173, %v371, 0.0
    %v403 = vadd.f32 %v401, %v402
    %v404 = vsel %vm173, %v373, 0.0
    %v405 = vadd.f32 %v403, %v404
    %v406 = vsel %vm173, %v375, 0.0
    %v407 = vadd.f32 %v405, %v406
    %v408 = vsel %vm173, %v377, 0.0
    %v409 = vadd.f32 %v407, %v408
    %v410 = vsel %vm173, %v379, 0.0
    %v411 = vadd.f32 %v409, %v410
    %v412 = vsel %vm173, %v381, 0.0
    %v413 = vadd.f32 %v411, %v412
    %v414 = vsel %vm173, %v383, 0.0
    %v415 = vadd.f32 %v413, %v414
    %v416 = vsel %vm173, %v385, 0.0
    %v417 = vadd.f32 %v415, %v416
    %v418 = vsel %vm173, %v356, 0.0
    %v419 = vsel %vm173, %v358, 0.0
    %v420 = vadd.f32 %v418, %v419
    %v421 = vsel %vm173, %v360, 0.0
    %v422 = vadd.f32 %v420, %v421
    %v423 = vsel %vm173, %v362, 0.0
    %v424 = vadd.f32 %v422, %v423
    %v425 = vsel %vm173, %v364, 0.0
    %v426 = vadd.f32 %v424, %v425
    %v427 = vsel %vm173, %v366, 0.0
    %v428 = vadd.f32 %v426, %v427
    %v429 = vsel %vm173, %v368, 0.0
    %v430 = vadd.f32 %v428, %v429
    %v431 = vsel %vm173, %v370, 0.0
    %v432 = vadd.f32 %v430, %v431
    %v433 = vsel %vm173, %v372, 0.0
    %v434 = vadd.f32 %v432, %v433
    %v435 = vsel %vm173, %v374, 0.0
    %v436 = vadd.f32 %v434, %v435
    %v437 = vsel %vm173, %v376, 0.0
    %v438 = vadd.f32 %v436, %v437
    %v439 = vsel %vm173, %v378, 0.0
    %v440 = vadd.f32 %v438, %v439
    %v441 = vsel %vm173, %v380, 0.0
    %v442 = vadd.f32 %v440, %v441
    %v443 = vsel %vm173, %v382, 0.0
    %v444 = vadd.f32 %v442, %v443
    %v445 = vsel %vm173, %v384, 0.0
    %v446 = vadd.f32 %v444, %v445
    %v447 = vsel %vm173, %v386, 0.0
    %v448 = vadd.f32 %v446, %v447
    %v449 = vmul.f32 %v53, %v417
    %v450 = vmul.f32 %v54, %v448
    %v451 = vsel %vm173, %v449, 0.0
    %v452 = vsel %vm173, %v450, 0.0
    %v453 = vadd.f32 %v451, %v452
    %v454 = vrot.slane %v453, 4
    %v455 = vadd.f32 %v453, %v454
    %v456 = vrot.slane %v455, 2
    %v457 = vadd.f32 %v455, %v456
    %v458 = vrot.slane %v457, 1
    %v459 = vadd.f32 %v457, %v458
    %s460 = scalar_lea.vmem %s6, 64
    %v461 = vld [vmem:[%s460] sm:$0xff]
    %v462 = vld [vmem:[%s460 + $0x8] sm:$0xff]
    %v463 = vmul.f32 %v461, %v459
    %v464 = vmul.f32 %v462, %v459
    %v465 = vadd.f32 %v305, %v463
    %v466 = vadd.f32 %v306, %v464
    %v467 = vmul.f32 %v55, %v417
    %v468 = vmul.f32 %v56, %v448
    %v469 = vsel %vm173, %v467, 0.0
    %v470 = vsel %vm173, %v468, 0.0
    %v471 = vadd.f32 %v469, %v470
    %v472 = vrot.slane %v471, 4
    %v473 = vadd.f32 %v471, %v472
    %v474 = vrot.slane %v473, 2
    %v475 = vadd.f32 %v473, %v474
    %v476 = vrot.slane %v475, 1
    %v477 = vadd.f32 %v475, %v476
    %s478 = scalar_lea.vmem %s6, 80
    %v479 = vld [vmem:[%s478] sm:$0xff]
    %v480 = vld [vmem:[%s478 + $0x8] sm:$0xff]
    %v481 = vmul.f32 %v479, %v477
    %v482 = vmul.f32 %v480, %v477
    %v483 = vadd.f32 %v465, %v481
    %v484 = vadd.f32 %v466, %v482
    %v485 = vmul.f32 %v57, %v417
    %v486 = vmul.f32 %v58, %v448
    %v487 = vsel %vm173, %v485, 0.0
    %v488 = vsel %vm173, %v486, 0.0
    %v489 = vadd.f32 %v487, %v488
    %v490 = vrot.slane %v489, 4
    %v491 = vadd.f32 %v489, %v490
    %v492 = vrot.slane %v491, 2
    %v493 = vadd.f32 %v491, %v492
    %v494 = vrot.slane %v493, 1
    %v495 = vadd.f32 %v493, %v494
    %s496 = scalar_lea.vmem %s6, 96
    %v497 = vld [vmem:[%s496] sm:$0xff]
    %v498 = vld [vmem:[%s496 + $0x8] sm:$0xff]
    %v499 = vmul.f32 %v497, %v495
    %v500 = vmul.f32 %v498, %v495
    %v501 = vadd.f32 %v483, %v499
    %v502 = vadd.f32 %v484, %v500
    %v503 = vmul.f32 %v59, %v417
    %v504 = vmul.f32 %v60, %v448
    %v505 = vsel %vm173, %v503, 0.0
    %v506 = vsel %vm173, %v504, 0.0
    %v507 = vadd.f32 %v505, %v506
    %v508 = vrot.slane %v507, 4
    %v509 = vadd.f32 %v507, %v508
    %v510 = vrot.slane %v509, 2
    %v511 = vadd.f32 %v509, %v510
    %v512 = vrot.slane %v511, 1
    %v513 = vadd.f32 %v511, %v512
    %s514 = scalar_lea.vmem %s6, 112
    %v515 = vld [vmem:[%s514] sm:$0xff]
    %v516 = vld [vmem:[%s514 + $0x8] sm:$0xff]
    %v517 = vmul.f32 %v515, %v513
    %v518 = vmul.f32 %v516, %v513
    %v519 = vadd.f32 %v501, %v517
    %v520 = vadd.f32 %v502, %v518
    %v523 = vrot.slane %v57, 1
    %v524 = vrot.slane %v57, 2
    %v525 = vrot.slane %v57, 3
    %v526 = vrot.slane %v57, 4
    %v527 = vrot.slane %v57, 5
    %v528 = vrot.slane %v57, 6
    %v529 = vrot.slane %v57, 7
    %v530 = vrot.slane %v58, 1
    %v531 = vrot.slane %v58, 2
    %v532 = vrot.slane %v58, 3
    %v533 = vrot.slane %v58, 4
    %v534 = vrot.slane %v58, 5
    %v535 = vrot.slane %v58, 6
    %v536 = vrot.slane %v58, 7
    %v537 = vperm.slane %v57, 0
    %v538 = vperm.slane %v523, 0
    %v539 = vperm.slane %v524, 0
    %v540 = vperm.slane %v525, 0
    %v541 = vperm.slane %v526, 0
    %v542 = vperm.slane %v527, 0
    %v543 = vperm.slane %v528, 0
    %v544 = vperm.slane %v529, 0
    %v545 = vperm.slane %v58, 0
    %v546 = vperm.slane %v530, 0
    %v547 = vperm.slane %v531, 0
    %v548 = vperm.slane %v532, 0
    %v549 = vperm.slane %v533, 0
    %v550 = vperm.slane %v534, 0
    %v551 = vperm.slane %v535, 0
    %v552 = vperm.slane %v536, 0
    %v569 = vmul.f32 %v61, %v537
    %v570 = vmul.f32 %v62, %v537
    %v571 = vmul.f32 %v63, %v538
    %v572 = vmul.f32 %v64, %v538
    %v573 = vmul.f32 %v65, %v539
    %v574 = vmul.f32 %v66, %v539
    %v575 = vmul.f32 %v67, %v540
    %v576 = vmul.f32 %v68, %v540
    %v577 = vmul.f32 %v69, %v541
    %v578 = vmul.f32 %v70, %v541
    %v579 = vmul.f32 %v71, %v542
    %v580 = vmul.f32 %v72, %v542
    %v581 = vmul.f32 %v73, %v543
    %v582 = vmul.f32 %v74, %v543
    %v583 = vmul.f32 %v75, %v544
    %v584 = vmul.f32 %v76, %v544
    %v585 = vmul.f32 %v77, %v545
    %v586 = vmul.f32 %v78, %v545
    %v587 = vmul.f32 %v79, %v546
    %v588 = vmul.f32 %v80, %v546
    %v589 = vmul.f32 %v81, %v547
    %v590 = vmul.f32 %v82, %v547
    %v591 = vmul.f32 %v83, %v548
    %v592 = vmul.f32 %v84, %v548
    %v593 = vmul.f32 %v85, %v549
    %v594 = vmul.f32 %v86, %v549
    %v595 = vmul.f32 %v87, %v550
    %v596 = vmul.f32 %v88, %v550
    %v597 = vmul.f32 %v89, %v551
    %v598 = vmul.f32 %v90, %v551
    %v599 = vmul.f32 %v91, %v552
    %v600 = vmul.f32 %v92, %v552
    %v601 = vsel %vm173, %v569, 0.0
    %v602 = vsel %vm173, %v571, 0.0
    %v603 = vadd.f32 %v601, %v602
    %v604 = vsel %vm173, %v573, 0.0
    %v605 = vadd.f32 %v603, %v604
    %v606 = vsel %vm173, %v575, 0.0
    %v607 = vadd.f32 %v605, %v606
    %v608 = vsel %vm173, %v577, 0.0
    %v609 = vadd.f32 %v607, %v608
    %v610 = vsel %vm173, %v579, 0.0
    %v611 = vadd.f32 %v609, %v610
    %v612 = vsel %vm173, %v581, 0.0
    %v613 = vadd.f32 %v611, %v612
    %v614 = vsel %vm173, %v583, 0.0
    %v615 = vadd.f32 %v613, %v614
    %v616 = vsel %vm173, %v585, 0.0
    %v617 = vadd.f32 %v615, %v616
    %v618 = vsel %vm173, %v587, 0.0
    %v619 = vadd.f32 %v617, %v618
    %v620 = vsel %vm173, %v589, 0.0
    %v621 = vadd.f32 %v619, %v620
    %v622 = vsel %vm173, %v591, 0.0
    %v623 = vadd.f32 %v621, %v622
    %v624 = vsel %vm173, %v593, 0.0
    %v625 = vadd.f32 %v623, %v624
    %v626 = vsel %vm173, %v595, 0.0
    %v627 = vadd.f32 %v625, %v626
    %v628 = vsel %vm173, %v597, 0.0
    %v629 = vadd.f32 %v627, %v628
    %v630 = vsel %vm173, %v599, 0.0
    %v631 = vadd.f32 %v629, %v630
    %v632 = vsel %vm173, %v570, 0.0
    %v633 = vsel %vm173, %v572, 0.0
    %v634 = vadd.f32 %v632, %v633
    %v635 = vsel %vm173, %v574, 0.0
    %v636 = vadd.f32 %v634, %v635
    %v637 = vsel %vm173, %v576, 0.0
    %v638 = vadd.f32 %v636, %v637
    %v639 = vsel %vm173, %v578, 0.0
    %v640 = vadd.f32 %v638, %v639
    %v641 = vsel %vm173, %v580, 0.0
    %v642 = vadd.f32 %v640, %v641
    %v643 = vsel %vm173, %v582, 0.0
    %v644 = vadd.f32 %v642, %v643
    %v645 = vsel %vm173, %v584, 0.0
    %v646 = vadd.f32 %v644, %v645
    %v647 = vsel %vm173, %v586, 0.0
    %v648 = vadd.f32 %v646, %v647
    %v649 = vsel %vm173, %v588, 0.0
    %v650 = vadd.f32 %v648, %v649
    %v651 = vsel %vm173, %v590, 0.0
    %v652 = vadd.f32 %v650, %v651
    %v653 = vsel %vm173, %v592, 0.0
    %v654 = vadd.f32 %v652, %v653
    %v655 = vsel %vm173, %v594, 0.0
    %v656 = vadd.f32 %v654, %v655
    %v657 = vsel %vm173, %v596, 0.0
    %v658 = vadd.f32 %v656, %v657
    %v659 = vsel %vm173, %v598, 0.0
    %v660 = vadd.f32 %v658, %v659
    %v661 = vsel %vm173, %v600, 0.0
    %v662 = vadd.f32 %v660, %v661
    %v663 = vmul.f32 %v53, %v631
    %v664 = vmul.f32 %v54, %v662
    %v665 = vsel %vm173, %v663, 0.0
    %v666 = vsel %vm173, %v664, 0.0
    %v667 = vadd.f32 %v665, %v666
    %v668 = vrot.slane %v667, 4
    %v669 = vadd.f32 %v667, %v668
    %v670 = vrot.slane %v669, 2
    %v671 = vadd.f32 %v669, %v670
    %v672 = vrot.slane %v671, 1
    %v673 = vadd.f32 %v671, %v672
    %s674 = scalar_lea.vmem %s6, 128
    %v675 = vld [vmem:[%s674] sm:$0xff]
    %v676 = vld [vmem:[%s674 + $0x8] sm:$0xff]
    %v677 = vmul.f32 %v675, %v673
    %v678 = vmul.f32 %v676, %v673
    %v679 = vadd.f32 %v519, %v677
    %v680 = vadd.f32 %v520, %v678
    %v681 = vmul.f32 %v55, %v631
    %v682 = vmul.f32 %v56, %v662
    %v683 = vsel %vm173, %v681, 0.0
    %v684 = vsel %vm173, %v682, 0.0
    %v685 = vadd.f32 %v683, %v684
    %v686 = vrot.slane %v685, 4
    %v687 = vadd.f32 %v685, %v686
    %v688 = vrot.slane %v687, 2
    %v689 = vadd.f32 %v687, %v688
    %v690 = vrot.slane %v689, 1
    %v691 = vadd.f32 %v689, %v690
    %s692 = scalar_lea.vmem %s6, 144
    %v693 = vld [vmem:[%s692] sm:$0xff]
    %v694 = vld [vmem:[%s692 + $0x8] sm:$0xff]
    %v695 = vmul.f32 %v693, %v691
    %v696 = vmul.f32 %v694, %v691
    %v697 = vadd.f32 %v679, %v695
    %v698 = vadd.f32 %v680, %v696
    %v699 = vmul.f32 %v57, %v631
    %v700 = vmul.f32 %v58, %v662
    %v701 = vsel %vm173, %v699, 0.0
    %v702 = vsel %vm173, %v700, 0.0
    %v703 = vadd.f32 %v701, %v702
    %v704 = vrot.slane %v703, 4
    %v705 = vadd.f32 %v703, %v704
    %v706 = vrot.slane %v705, 2
    %v707 = vadd.f32 %v705, %v706
    %v708 = vrot.slane %v707, 1
    %v709 = vadd.f32 %v707, %v708
    %s710 = scalar_lea.vmem %s6, 160
    %v711 = vld [vmem:[%s710] sm:$0xff]
    %v712 = vld [vmem:[%s710 + $0x8] sm:$0xff]
    %v713 = vmul.f32 %v711, %v709
    %v714 = vmul.f32 %v712, %v709
    %v715 = vadd.f32 %v697, %v713
    %v716 = vadd.f32 %v698, %v714
    %v717 = vmul.f32 %v59, %v631
    %v718 = vmul.f32 %v60, %v662
    %v719 = vsel %vm173, %v717, 0.0
    %v720 = vsel %vm173, %v718, 0.0
    %v721 = vadd.f32 %v719, %v720
    %v722 = vrot.slane %v721, 4
    %v723 = vadd.f32 %v721, %v722
    %v724 = vrot.slane %v723, 2
    %v725 = vadd.f32 %v723, %v724
    %v726 = vrot.slane %v725, 1
    %v727 = vadd.f32 %v725, %v726
    %s728 = scalar_lea.vmem %s6, 176
    %v729 = vld [vmem:[%s728] sm:$0xff]
    %v730 = vld [vmem:[%s728 + $0x8] sm:$0xff]
    %v731 = vmul.f32 %v729, %v727
    %v732 = vmul.f32 %v730, %v727
    %v733 = vadd.f32 %v715, %v731
    %v734 = vadd.f32 %v716, %v732
    %v737 = vrot.slane %v59, 1
    %v738 = vrot.slane %v59, 2
    %v739 = vrot.slane %v59, 3
    %v740 = vrot.slane %v59, 4
    %v741 = vrot.slane %v59, 5
    %v742 = vrot.slane %v59, 6
    %v743 = vrot.slane %v59, 7
    %v744 = vrot.slane %v60, 1
    %v745 = vrot.slane %v60, 2
    %v746 = vrot.slane %v60, 3
    %v747 = vrot.slane %v60, 4
    %v748 = vrot.slane %v60, 5
    %v749 = vrot.slane %v60, 6
    %v750 = vrot.slane %v60, 7
    %v751 = vperm.slane %v59, 0
    %v752 = vperm.slane %v737, 0
    %v753 = vperm.slane %v738, 0
    %v754 = vperm.slane %v739, 0
    %v755 = vperm.slane %v740, 0
    %v756 = vperm.slane %v741, 0
    %v757 = vperm.slane %v742, 0
    %v758 = vperm.slane %v743, 0
    %v759 = vperm.slane %v60, 0
    %v760 = vperm.slane %v744, 0
    %v761 = vperm.slane %v745, 0
    %v762 = vperm.slane %v746, 0
    %v763 = vperm.slane %v747, 0
    %v764 = vperm.slane %v748, 0
    %v765 = vperm.slane %v749, 0
    %v766 = vperm.slane %v750, 0
    %v783 = vmul.f32 %v61, %v751
    %v784 = vmul.f32 %v62, %v751
    %v785 = vmul.f32 %v63, %v752
    %v786 = vmul.f32 %v64, %v752
    %v787 = vmul.f32 %v65, %v753
    %v788 = vmul.f32 %v66, %v753
    %v789 = vmul.f32 %v67, %v754
    %v790 = vmul.f32 %v68, %v754
    %v791 = vmul.f32 %v69, %v755
    %v792 = vmul.f32 %v70, %v755
    %v793 = vmul.f32 %v71, %v756
    %v794 = vmul.f32 %v72, %v756
    %v795 = vmul.f32 %v73, %v757
    %v796 = vmul.f32 %v74, %v757
    %v797 = vmul.f32 %v75, %v758
    %v798 = vmul.f32 %v76, %v758
    %v799 = vmul.f32 %v77, %v759
    %v800 = vmul.f32 %v78, %v759
    %v801 = vmul.f32 %v79, %v760
    %v802 = vmul.f32 %v80, %v760
    %v803 = vmul.f32 %v81, %v761
    %v804 = vmul.f32 %v82, %v761
    %v805 = vmul.f32 %v83, %v762
    %v806 = vmul.f32 %v84, %v762
    %v807 = vmul.f32 %v85, %v763
    %v808 = vmul.f32 %v86, %v763
    %v809 = vmul.f32 %v87, %v764
    %v810 = vmul.f32 %v88, %v764
    %v811 = vmul.f32 %v89, %v765
    %v812 = vmul.f32 %v90, %v765
    %v813 = vmul.f32 %v91, %v766
    %v814 = vmul.f32 %v92, %v766
    %v815 = vsel %vm173, %v783, 0.0
    %v816 = vsel %vm173, %v785, 0.0
    %v817 = vadd.f32 %v815, %v816
    %v818 = vsel %vm173, %v787, 0.0
    %v819 = vadd.f32 %v817, %v818
    %v820 = vsel %vm173, %v789, 0.0
    %v821 = vadd.f32 %v819, %v820
    %v822 = vsel %vm173, %v791, 0.0
    %v823 = vadd.f32 %v821, %v822
    %v824 = vsel %vm173, %v793, 0.0
    %v825 = vadd.f32 %v823, %v824
    %v826 = vsel %vm173, %v795, 0.0
    %v827 = vadd.f32 %v825, %v826
    %v828 = vsel %vm173, %v797, 0.0
    %v829 = vadd.f32 %v827, %v828
    %v830 = vsel %vm173, %v799, 0.0
    %v831 = vadd.f32 %v829, %v830
    %v832 = vsel %vm173, %v801, 0.0
    %v833 = vadd.f32 %v831, %v832
    %v834 = vsel %vm173, %v803, 0.0
    %v835 = vadd.f32 %v833, %v834
    %v836 = vsel %vm173, %v805, 0.0
    %v837 = vadd.f32 %v835, %v836
    %v838 = vsel %vm173, %v807, 0.0
    %v839 = vadd.f32 %v837, %v838
    %v840 = vsel %vm173, %v809, 0.0
    %v841 = vadd.f32 %v839, %v840
    %v842 = vsel %vm173, %v811, 0.0
    %v843 = vadd.f32 %v841, %v842
    %v844 = vsel %vm173, %v813, 0.0
    %v845 = vadd.f32 %v843, %v844
    %v846 = vsel %vm173, %v784, 0.0
    %v847 = vsel %vm173, %v786, 0.0
    %v848 = vadd.f32 %v846, %v847
    %v849 = vsel %vm173, %v788, 0.0
    %v850 = vadd.f32 %v848, %v849
    %v851 = vsel %vm173, %v790, 0.0
    %v852 = vadd.f32 %v850, %v851
    %v853 = vsel %vm173, %v792, 0.0
    %v854 = vadd.f32 %v852, %v853
    %v855 = vsel %vm173, %v794, 0.0
    %v856 = vadd.f32 %v854, %v855
    %v857 = vsel %vm173, %v796, 0.0
    %v858 = vadd.f32 %v856, %v857
    %v859 = vsel %vm173, %v798, 0.0
    %v860 = vadd.f32 %v858, %v859
    %v861 = vsel %vm173, %v800, 0.0
    %v862 = vadd.f32 %v860, %v861
    %v863 = vsel %vm173, %v802, 0.0
    %v864 = vadd.f32 %v862, %v863
    %v865 = vsel %vm173, %v804, 0.0
    %v866 = vadd.f32 %v864, %v865
    %v867 = vsel %vm173, %v806, 0.0
    %v868 = vadd.f32 %v866, %v867
    %v869 = vsel %vm173, %v808, 0.0
    %v870 = vadd.f32 %v868, %v869
    %v871 = vsel %vm173, %v810, 0.0
    %v872 = vadd.f32 %v870, %v871
    %v873 = vsel %vm173, %v812, 0.0
    %v874 = vadd.f32 %v872, %v873
    %v875 = vsel %vm173, %v814, 0.0
    %v876 = vadd.f32 %v874, %v875
    %v877 = vmul.f32 %v53, %v845
    %v878 = vmul.f32 %v54, %v876
    %v879 = vsel %vm173, %v877, 0.0
    %v880 = vsel %vm173, %v878, 0.0
    %v881 = vadd.f32 %v879, %v880
    %v882 = vrot.slane %v881, 4
    %v883 = vadd.f32 %v881, %v882
    %v884 = vrot.slane %v883, 2
    %v885 = vadd.f32 %v883, %v884
    %v886 = vrot.slane %v885, 1
    %v887 = vadd.f32 %v885, %v886
    %s888 = scalar_lea.vmem %s6, 192
    %v889 = vld [vmem:[%s888] sm:$0xff]
    %v890 = vld [vmem:[%s888 + $0x8] sm:$0xff]
    %v891 = vmul.f32 %v889, %v887
    %v892 = vmul.f32 %v890, %v887
    %v893 = vadd.f32 %v733, %v891
    %v894 = vadd.f32 %v734, %v892
    %v895 = vmul.f32 %v55, %v845
    %v896 = vmul.f32 %v56, %v876
    %v897 = vsel %vm173, %v895, 0.0
    %v898 = vsel %vm173, %v896, 0.0
    %v899 = vadd.f32 %v897, %v898
    %v900 = vrot.slane %v899, 4
    %v901 = vadd.f32 %v899, %v900
    %v902 = vrot.slane %v901, 2
    %v903 = vadd.f32 %v901, %v902
    %v904 = vrot.slane %v903, 1
    %v905 = vadd.f32 %v903, %v904
    %s906 = scalar_lea.vmem %s6, 208
    %v907 = vld [vmem:[%s906] sm:$0xff]
    %v908 = vld [vmem:[%s906 + $0x8] sm:$0xff]
    %v909 = vmul.f32 %v907, %v905
    %v910 = vmul.f32 %v908, %v905
    %v911 = vadd.f32 %v893, %v909
    %v912 = vadd.f32 %v894, %v910
    %v913 = vmul.f32 %v57, %v845
    %v914 = vmul.f32 %v58, %v876
    %v915 = vsel %vm173, %v913, 0.0
    %v916 = vsel %vm173, %v914, 0.0
    %v917 = vadd.f32 %v915, %v916
    %v918 = vrot.slane %v917, 4
    %v919 = vadd.f32 %v917, %v918
    %v920 = vrot.slane %v919, 2
    %v921 = vadd.f32 %v919, %v920
    %v922 = vrot.slane %v921, 1
    %v923 = vadd.f32 %v921, %v922
    %s924 = scalar_lea.vmem %s6, 224
    %v925 = vld [vmem:[%s924] sm:$0xff]
    %v926 = vld [vmem:[%s924 + $0x8] sm:$0xff]
    %v927 = vmul.f32 %v925, %v923
    %v928 = vmul.f32 %v926, %v923
    %v929 = vadd.f32 %v911, %v927
    %v930 = vadd.f32 %v912, %v928
    %v931 = vmul.f32 %v59, %v845
    %v932 = vmul.f32 %v60, %v876
    %v933 = vsel %vm173, %v931, 0.0
    %v934 = vsel %vm173, %v932, 0.0
    %v935 = vadd.f32 %v933, %v934
    %v936 = vrot.slane %v935, 4
    %v937 = vadd.f32 %v935, %v936
    %v938 = vrot.slane %v937, 2
    %v939 = vadd.f32 %v937, %v938
    %v940 = vrot.slane %v939, 1
    %v941 = vadd.f32 %v939, %v940
    %s942 = scalar_lea.vmem %s6, 240
    %v943 = vld [vmem:[%s942] sm:$0xff]
    %v944 = vld [vmem:[%s942 + $0x8] sm:$0xff]
    %v945 = vmul.f32 %v943, %v941
    %v946 = vmul.f32 %v944, %v941
    %v947 = vadd.f32 %v929, %v945
    %v948 = vadd.f32 %v930, %v946
    %v949 = vmul.f32 %v947, 0.5
    %v950 = vmul.f32 %v948, 0.5
    %v951 = vsub.f32 %v51, %v949
    %v952 = vsub.f32 %v52, %v950
    %v953 = vld [vmem:[%s5] sm:$0xff]
    %v954 = vld [vmem:[%s5 + $0x8] sm:$0xff]
    %v955 = vld [vmem:[%s5 + $0x10] sm:$0xff]
    %v956 = vld [vmem:[%s5 + $0x18] sm:$0xff]
    %v957 = vld [vmem:[%s5 + $0x20] sm:$0xff]
    %v958 = vld [vmem:[%s5 + $0x28] sm:$0xff]
    %v959 = vld [vmem:[%s5 + $0x30] sm:$0xff]
    %v960 = vld [vmem:[%s5 + $0x38] sm:$0xff]
    %v961 = vld [vmem:[%s5 + $0x40] sm:$0xff]
    %v962 = vld [vmem:[%s5 + $0x48] sm:$0xff]
    %v963 = vld [vmem:[%s5 + $0x50] sm:$0xff]
    %v964 = vld [vmem:[%s5 + $0x58] sm:$0xff]
    %v965 = vld [vmem:[%s5 + $0x60] sm:$0xff]
    %v966 = vld [vmem:[%s5 + $0x68] sm:$0xff]
    %v967 = vld [vmem:[%s5 + $0x70] sm:$0xff]
    %v968 = vld [vmem:[%s5 + $0x78] sm:$0xff]
    %v969 = vld [vmem:[%s5 + $0x80] sm:$0xff]
    %v970 = vld [vmem:[%s5 + $0x88] sm:$0xff]
    %v971 = vld [vmem:[%s5 + $0x90] sm:$0xff]
    %v972 = vld [vmem:[%s5 + $0x98] sm:$0xff]
    %v973 = vld [vmem:[%s5 + $0xa0] sm:$0xff]
    %v974 = vld [vmem:[%s5 + $0xa8] sm:$0xff]
    %v975 = vld [vmem:[%s5 + $0xb0] sm:$0xff]
    %v976 = vld [vmem:[%s5 + $0xb8] sm:$0xff]
    %v977 = vld [vmem:[%s5 + $0xc0] sm:$0xff]
    %v978 = vld [vmem:[%s5 + $0xc8] sm:$0xff]
    %v979 = vld [vmem:[%s5 + $0xd0] sm:$0xff]
    %v980 = vld [vmem:[%s5 + $0xd8] sm:$0xff]
    %v981 = vld [vmem:[%s5 + $0xe0] sm:$0xff]
    %v982 = vld [vmem:[%s5 + $0xe8] sm:$0xff]
    %v983 = vld [vmem:[%s5 + $0xf0] sm:$0xff]
    %v984 = vld [vmem:[%s5 + $0xf8] sm:$0xff]
    %v987 = vrot.slane %v951, 1
    %v988 = vrot.slane %v951, 2
    %v989 = vrot.slane %v951, 3
    %v990 = vrot.slane %v951, 4
    %v991 = vrot.slane %v951, 5
    %v992 = vrot.slane %v951, 6
    %v993 = vrot.slane %v951, 7
    %v994 = vrot.slane %v952, 1
    %v995 = vrot.slane %v952, 2
    %v996 = vrot.slane %v952, 3
    %v997 = vrot.slane %v952, 4
    %v998 = vrot.slane %v952, 5
    %v999 = vrot.slane %v952, 6
    %v1000 = vrot.slane %v952, 7
    %v1001 = vperm.slane %v951, 0
    %v1002 = vperm.slane %v987, 0
    %v1003 = vperm.slane %v988, 0
    %v1004 = vperm.slane %v989, 0
    %v1005 = vperm.slane %v990, 0
    %v1006 = vperm.slane %v991, 0
    %v1007 = vperm.slane %v992, 0
    %v1008 = vperm.slane %v993, 0
    %v1009 = vperm.slane %v952, 0
    %v1010 = vperm.slane %v994, 0
    %v1011 = vperm.slane %v995, 0
    %v1012 = vperm.slane %v996, 0
    %v1013 = vperm.slane %v997, 0
    %v1014 = vperm.slane %v998, 0
    %v1015 = vperm.slane %v999, 0
    %v1016 = vperm.slane %v1000, 0
    %v1033 = vmul.f32 %v953, %v1001
    %v1034 = vmul.f32 %v954, %v1001
    %v1035 = vmul.f32 %v955, %v1002
    %v1036 = vmul.f32 %v956, %v1002
    %v1037 = vmul.f32 %v957, %v1003
    %v1038 = vmul.f32 %v958, %v1003
    %v1039 = vmul.f32 %v959, %v1004
    %v1040 = vmul.f32 %v960, %v1004
    %v1041 = vmul.f32 %v961, %v1005
    %v1042 = vmul.f32 %v962, %v1005
    %v1043 = vmul.f32 %v963, %v1006
    %v1044 = vmul.f32 %v964, %v1006
    %v1045 = vmul.f32 %v965, %v1007
    %v1046 = vmul.f32 %v966, %v1007
    %v1047 = vmul.f32 %v967, %v1008
    %v1048 = vmul.f32 %v968, %v1008
    %v1049 = vmul.f32 %v969, %v1009
    %v1050 = vmul.f32 %v970, %v1009
    %v1051 = vmul.f32 %v971, %v1010
    %v1052 = vmul.f32 %v972, %v1010
    %v1053 = vmul.f32 %v973, %v1011
    %v1054 = vmul.f32 %v974, %v1011
    %v1055 = vmul.f32 %v975, %v1012
    %v1056 = vmul.f32 %v976, %v1012
    %v1057 = vmul.f32 %v977, %v1013
    %v1058 = vmul.f32 %v978, %v1013
    %v1059 = vmul.f32 %v979, %v1014
    %v1060 = vmul.f32 %v980, %v1014
    %v1061 = vmul.f32 %v981, %v1015
    %v1062 = vmul.f32 %v982, %v1015
    %v1063 = vmul.f32 %v983, %v1016
    %v1064 = vmul.f32 %v984, %v1016
    %v1065 = vsel %vm173, %v1033, 0.0
    %v1066 = vsel %vm173, %v1035, 0.0
    %v1067 = vadd.f32 %v1065, %v1066
    %v1068 = vsel %vm173, %v1037, 0.0
    %v1069 = vadd.f32 %v1067, %v1068
    %v1070 = vsel %vm173, %v1039, 0.0
    %v1071 = vadd.f32 %v1069, %v1070
    %v1072 = vsel %vm173, %v1041, 0.0
    %v1073 = vadd.f32 %v1071, %v1072
    %v1074 = vsel %vm173, %v1043, 0.0
    %v1075 = vadd.f32 %v1073, %v1074
    %v1076 = vsel %vm173, %v1045, 0.0
    %v1077 = vadd.f32 %v1075, %v1076
    %v1078 = vsel %vm173, %v1047, 0.0
    %v1079 = vadd.f32 %v1077, %v1078
    %v1080 = vsel %vm173, %v1049, 0.0
    %v1081 = vadd.f32 %v1079, %v1080
    %v1082 = vsel %vm173, %v1051, 0.0
    %v1083 = vadd.f32 %v1081, %v1082
    %v1084 = vsel %vm173, %v1053, 0.0
    %v1085 = vadd.f32 %v1083, %v1084
    %v1086 = vsel %vm173, %v1055, 0.0
    %v1087 = vadd.f32 %v1085, %v1086
    %v1088 = vsel %vm173, %v1057, 0.0
    %v1089 = vadd.f32 %v1087, %v1088
    %v1090 = vsel %vm173, %v1059, 0.0
    %v1091 = vadd.f32 %v1089, %v1090
    %v1092 = vsel %vm173, %v1061, 0.0
    %v1093 = vadd.f32 %v1091, %v1092
    %v1094 = vsel %vm173, %v1063, 0.0
    %v1095 = vadd.f32 %v1093, %v1094
    %v1096 = vsel %vm173, %v1034, 0.0
    %v1097 = vsel %vm173, %v1036, 0.0
    %v1098 = vadd.f32 %v1096, %v1097
    %v1099 = vsel %vm173, %v1038, 0.0
    %v1100 = vadd.f32 %v1098, %v1099
    %v1101 = vsel %vm173, %v1040, 0.0
    %v1102 = vadd.f32 %v1100, %v1101
    %v1103 = vsel %vm173, %v1042, 0.0
    %v1104 = vadd.f32 %v1102, %v1103
    %v1105 = vsel %vm173, %v1044, 0.0
    %v1106 = vadd.f32 %v1104, %v1105
    %v1107 = vsel %vm173, %v1046, 0.0
    %v1108 = vadd.f32 %v1106, %v1107
    %v1109 = vsel %vm173, %v1048, 0.0
    %v1110 = vadd.f32 %v1108, %v1109
    %v1111 = vsel %vm173, %v1050, 0.0
    %v1112 = vadd.f32 %v1110, %v1111
    %v1113 = vsel %vm173, %v1052, 0.0
    %v1114 = vadd.f32 %v1112, %v1113
    %v1115 = vsel %vm173, %v1054, 0.0
    %v1116 = vadd.f32 %v1114, %v1115
    %v1117 = vsel %vm173, %v1056, 0.0
    %v1118 = vadd.f32 %v1116, %v1117
    %v1119 = vsel %vm173, %v1058, 0.0
    %v1120 = vadd.f32 %v1118, %v1119
    %v1121 = vsel %vm173, %v1060, 0.0
    %v1122 = vadd.f32 %v1120, %v1121
    %v1123 = vsel %vm173, %v1062, 0.0
    %v1124 = vadd.f32 %v1122, %v1123
    %v1125 = vsel %vm173, %v1064, 0.0
    %v1126 = vadd.f32 %v1124, %v1125
    %v1127 = vsub.f32 %v49, %v47
    %v1128 = vsub.f32 %v50, %v48
    %v1129 = vmul.f32 %v1127, %v1127
    %v1130 = vmul.f32 %v1128, %v1128
    %v1131 = vsel %vm173, %v1129, 0.0
    %v1132 = vsel %vm173, %v1130, 0.0
    %v1133 = vadd.f32 %v1131, %v1132
    %v1134 = vrot.slane %v1133, 4
    %v1135 = vadd.f32 %v1133, %v1134
    %v1136 = vrot.slane %v1135, 2
    %v1137 = vadd.f32 %v1135, %v1136
    %v1138 = vrot.slane %v1137, 1
    %v1139 = vadd.f32 %v1137, %v1138
    %v1140 = vmul.f32 %v53, %v53
    %v1141 = vmul.f32 %v54, %v54
    %v1142 = vmul.f32 %v55, %v55
    %v1143 = vmul.f32 %v56, %v56
    %v1144 = vmul.f32 %v57, %v57
    %v1145 = vmul.f32 %v58, %v58
    %v1146 = vmul.f32 %v59, %v59
    %v1147 = vmul.f32 %v60, %v60
    %v1148 = vsel %vm173, %v1140, 0.0
    %v1149 = vsel %vm173, %v1142, 0.0
    %v1150 = vadd.f32 %v1148, %v1149
    %v1151 = vsel %vm173, %v1144, 0.0
    %v1152 = vadd.f32 %v1150, %v1151
    %v1153 = vsel %vm173, %v1146, 0.0
    %v1154 = vadd.f32 %v1152, %v1153
    %v1155 = vsel %vm173, %v1141, 0.0
    %v1156 = vsel %vm173, %v1143, 0.0
    %v1157 = vadd.f32 %v1155, %v1156
    %v1158 = vsel %vm173, %v1145, 0.0
    %v1159 = vadd.f32 %v1157, %v1158
    %v1160 = vsel %vm173, %v1147, 0.0
    %v1161 = vadd.f32 %v1159, %v1160
    %v1162 = vsel %vm173, %v1154, 0.0
    %v1163 = vsel %vm173, %v1161, 0.0
    %v1164 = vadd.f32 %v1162, %v1163
    %v1165 = vrot.slane %v1164, 4
    %v1166 = vadd.f32 %v1164, %v1165
    %v1167 = vrot.slane %v1166, 2
    %v1168 = vadd.f32 %v1166, %v1167
    %v1169 = vrot.slane %v1168, 1
    %v1170 = vadd.f32 %v1168, %v1169
    %v1171 = vmul.f32 %v1095, %v1095
    %v1172 = vmul.f32 %v1126, %v1126
    %v1173 = vsel %vm173, %v1171, 0.0
    %v1174 = vsel %vm173, %v1172, 0.0
    %v1175 = vadd.f32 %v1173, %v1174
    %v1176 = vrot.slane %v1175, 4
    %v1177 = vadd.f32 %v1175, %v1176
    %v1178 = vrot.slane %v1177, 2
    %v1179 = vadd.f32 %v1177, %v1178
    %v1180 = vrot.slane %v1179, 1
    %v1181 = vadd.f32 %v1179, %v1180
    %v1182 = vld [vmem:[#allocation2] sm:$0x1]
    %v1183 = vmul.f32 %v1139, 0.0078125
    %v1184 = vmul.f32 %v1170, 0.0875
    %v1185 = vadd.f32 %v1183, %v1184
    %v1186 = vmul.f32 %v1181, 0.1625
    %v1187 = vadd.f32 %v1185, %v1186
    %v1188 = vadd.f32 %v1182, %v1187
    %vm1189 = vcmask 57344
    %1190 = vst.msk [vmem:[#allocation2] sm:$0x1] %vm1189, %v1188
    %v1191 = vld [vmem:[%s7] sm:$0xff]
    %v1192 = vld [vmem:[%s7 + $0x8] sm:$0xff]
    %v1193 = vld [vmem:[%s8] sm:$0xff]
    %v1194 = vld [vmem:[%s8 + $0x8] sm:$0xff]
    %v1195 = vsub.f32 %v1191, %v1193
    %v1196 = vsub.f32 %v1192, %v1194
    %v1197 = vld [vmem:[#allocation4] sm:$0x3]
    %v1198 = vmul.f32 %v1195, %v1195
    %v1199 = vmul.f32 %v1196, %v1196
    %v1200 = vrot.slane %v1198, 4
    %v1201 = vadd.f32 %v1198, %v1200
    %v1202 = vrot.slane %v1201, 2
    %v1203 = vadd.f32 %v1201, %v1202
    %v1204 = vrot.slane %v1203, 1
    %v1205 = vadd.f32 %v1203, %v1204
    %v1206 = vrot.slane %v1199, 4
    %v1207 = vadd.f32 %v1199, %v1206
    %v1208 = vrot.slane %v1207, 2
    %v1209 = vadd.f32 %v1207, %v1208
    %v1210 = vrot.slane %v1209, 1
    %v1211 = vadd.f32 %v1209, %v1210
    %v1212 = vmul.f32 %v1205, 0.1125
    %v1213 = vmul.f32 %v1211, 0.1125
    %v1216 = vrot.slane %v1213, 7
    %vm1217 = vcmask 1040384
    %v1218 = vsel %vm1217, %v1212, %v1216
    %v1220 = vadd.f32 %v1197, %v1218
    %v1221 = vlaneseq
    %vm1222 = vcmp.ge.s32.totalorder %v1221, 0
    %vm1223 = vcmp.lt.s32.totalorder %v1221, 256
    %vm1224 = vmand %vm1222, %vm1223
    %1225 = vst.msk [vmem:[#allocation4] sm:$0x3] %vm1224, %v1220
    // Predicated region
    $region42: #{tpu_custom_call.1} parent=1 // pred_check
      _
    $region43: #{tpu_custom_call.1} parent=1 // pred_check_branch
      %1227 = sbr.rel (0) target = $region45
    $region44: #{tpu_custom_call.1} parent=1 // pred_region
      %1229 = vsyncadd [#allocation3], 0
      %s1231 = sshll.u32 [#allocation2], 4
      %s1232 = int_to_ptr.vmem [resolvable:$true] %s1231
      %s1233 = sshll.u32 %s9, 4
      %s1234 = int_to_ptr.hbm [resolvable:$true] %s1233
      %1236 = dma.vmem_to_hbm [thread:$0]  %s1232, 16, %s1234, [#allocation3]
    $region45: #{tpu_custom_call.1} parent=1 // pred_fallthru
      _
    // Predicated region
    $region46: #{tpu_custom_call.1} parent=1 // pred_check
      _
    $region47: #{tpu_custom_call.1} parent=1 // pred_check_branch
      %1238 = sbr.rel (0) target = $region49
    $region48: #{tpu_custom_call.1} parent=1 // pred_region
      %1240 = vsyncadd [#allocation5], 0
      %s1242 = sshll.u32 [#allocation4], 4
      %s1243 = int_to_ptr.vmem [resolvable:$true] %s1242
      %s1244 = sshll.u32 %s10, 4
      %s1245 = int_to_ptr.hbm [resolvable:$true] %s1244
      %1247 = dma.vmem_to_hbm [thread:$0]  %s1243, 32, %s1245, [#allocation5]
    $region49: #{tpu_custom_call.1} parent=1 // pred_fallthru
      _
    // Predicated region
    $region50: #{tpu_custom_call.1} parent=1 // pred_check
      _
    $region51: #{tpu_custom_call.1} parent=1 // pred_check_branch
      %1249 = sbr.rel (0) target = $region53
    $region52: #{tpu_custom_call.1} parent=1 // pred_region
      %1251 = dma.done [#allocation3], 16
    $region53: #{tpu_custom_call.1} parent=1 // pred_fallthru
      _
    // Predicated region
    $region54: #{tpu_custom_call.1} parent=1 // pred_check
      _
    $region55: #{tpu_custom_call.1} parent=1 // pred_check_branch
      %1253 = sbr.rel (0) target = $region57
    $region56: #{tpu_custom_call.1} parent=1 // pred_region
      %1255 = dma.done [#allocation5], 32
    $region57: #{tpu_custom_call.1} parent=1 // pred_fallthru
      _
    %1256 = vsyncpa [#allocation3], 1
    %1257 = vsyncpa [#allocation5], 1

</llo_original>
